<compile_context>
chip_gen: v7x
topology: tpu7x:2x2x1
jax: 0.10.0
libtpu: 0.0.40
codegen_flags: <defaults>
</compile_context>

<pallas_src>
import jax
import jax.numpy as jnp
import numpy as np
from jax import lax
from jax.experimental import pallas as pl
from jax.experimental.pallas import tpu as pltpu

EPS = 1e-5       # PyTorch BatchNorm2d default eps
LANE = 128       # channel axes are padded to a multiple of the lane width


def _hardswish(x):
    # PyTorch nn.Hardswish: x * relu6(x + 3) / 6
    return x * jnp.clip(x + 3.0, 0.0, 6.0) * (1.0 / 6.0)


def _round_up(x, m):
    return (x + m - 1) // m * m


# ----------------------------------------------------------------------------
# Fused kernel: one (batch, row-tile) step computes
#   y1  = HardSwish(folded depthwise 3x3 (x) + folded bias)
#   out = HardSwish(y1 @ folded pointwise weight + folded bias)
# ----------------------------------------------------------------------------
def _fused_kernel(x_main_ref, x_top_ref, x_bot_ref,
                  wdw_ref, bdw_ref, wpw_ref, bpw_ref,
                  out_ref, xpad_ref):
    TH, W, C = x_main_ref.shape[1], x_main_ref.shape[2], x_main_ref.shape[3]
    O = out_ref.shape[3]
    r = pl.program_id(1)
    nrows = pl.num_programs(1)

    # ---- assemble the SAME-padded tile in the VMEM scratch -------------------
    # scratch layout along W: [0] zero column | [1, 1+W) data | [1+W] zero column
    zero_col = jnp.zeros((TH + 2, 1, C), jnp.float32)
    xpad_ref[:, 0:1, :] = zero_col
    xpad_ref[:, W + 1:W + 2, :] = zero_col
    xpad_ref[1:TH + 1, 1:W + 1, :] = x_main_ref[0]

    # 1-row top/bottom halos: @pl.when-guarded stores (no full-tile selects).
    @pl.when(r > 0)
    def _():
        xpad_ref[0:1, 1:W + 1, :] = x_top_ref[0]

    @pl.when(r == 0)
    def _():
        xpad_ref[0:1, 1:W + 1, :] = jnp.zeros((1, W, C), jnp.float32)

    @pl.when(r < nrows - 1)
    def _():
        xpad_ref[TH + 1:TH + 2, 1:W + 1, :] = x_bot_ref[0]

    @pl.when(r == nrows - 1)
    def _():
        xpad_ref[TH + 1:TH + 2, 1:W + 1, :] = jnp.zeros((1, W, C), jnp.float32)

    # ---- folded depthwise 3x3: per-tap reads from the scratch ref ------------
    # Only the (TH, W, C) accumulator stays live in vregs; each tap is a fresh
    # VMEM load the LLO scheduler can pipeline.  Accumulator is seeded with the
    # broadcast folded bias (saves one full add pass).
    wdw = wdw_ref[...]                                         # (3, 3, C), tiny
    acc = jnp.broadcast_to(bdw_ref[0, :], (TH, W, C))
    for dy in range(3):
        for dx in range(3):
            acc = acc + xpad_ref[dy:dy + TH, dx:dx + W, :] * wdw[dy, dx, :]
    y1 = _hardswish(acc)                                       # (TH, W, C) f32

    # ---- folded pointwise 1x1: one MXU matmul + HardSwish --------------------
    y2 = y1.reshape(TH * W, C).astype(wpw_ref.dtype)           # bf16 (or f32)
    o = jnp.dot(y2, wpw_ref[...], preferred_element_type=jnp.float32)
    out_ref[0] = _hardswish(o + bpw_ref[0, :]).reshape(TH, W, O)


# ----------------------------------------------------------------------------
# Wrapper helpers
# ----------------------------------------------------------------------------
def _fold_params(params, pw_dtype):
    """Fold all branches into one depthwise conv and one pointwise conv."""
    wdw = params["wdw_f"].sum(axis=0)                                   # (3,3,C)
    wdw = wdw.at[1, 1, :].add(params["s1x1"] + params["sb1"])           # 1x1-dw + bn1
    bdw = params["bdw_f"].sum(axis=0) + params["t1x1"] + params["tb1"]  # (C,)

    wpw = params["wpw_f"].sum(axis=0) + jnp.diag(params["sb2"])         # (C,O) + bn2
    bpw = params["bpw_f"].sum(axis=0) + params["tb2"]                   # (O,)
    return (wdw.astype(jnp.float32), bdw.astype(jnp.float32),
            wpw.astype(pw_dtype), bpw.astype(jnp.float32))


def _physical_vmem_bytes():
    """Per-TensorCore physical VMEM; conservative 64 MiB (v7x) fallback."""
    try:
        info = pltpu.get_tpu_info()
        for attr in ("vmem_capacity_bytes", "vmem_bytes", "vmem_size_bytes"):
            v = getattr(info, attr, None)
            if v:
                return int(min(max(int(v), 64 << 20), 128 << 20))
    except Exception:
        pass
    return 64 << 20


def _pick_row_tile(H, W, C, O, budget_bytes, pw_itemsize):
    """Largest row tile whose full per-step resident VMEM fits budget_bytes."""
    f32 = 4
    # broadcast weights (counted x2 buffers, conservatively)
    w_bytes = 2 * (f32 * (9 * C + C + O) + pw_itemsize * C * O)

    def need(th):
        return (f32 * (th + 2) * (W + 2) * C          # halo-padded scratch
                + 2 * f32 * th * W * C                # main input (double buffered)
                + 2 * 2 * f32 * W * C                 # top/bot halo rows (x2 buf)
                + 2 * f32 * th * W * O                # output (double buffered)
                + w_bytes)

    best = 1
    for th in range(1, H + 1):
        if need(th) <= budget_bytes:
            best = th

    # Snap TH down so TH*W is a multiple of 256 (full MXU rows on v6e/v7x),
    # as long as it costs at most half the tile.
    for th in range(best, 0, -1):
        if (th * W) % 256 == 0:
            if 2 * th >= best:
                best = th
            break
    return best


def mobileone_block_pallas_nhwc(x, params, *, pw_dtype=jnp.bfloat16):
    """Fused MobileOneBlock forward.  x: (N, H, W, C) -> (N, H, W, O) f32."""
    x = x.astype(jnp.float32)
    N, H, W, C = x.shape
    O = params["wpw_f"].shape[-1]
    assert C == O, "bn1/bn2 identity path requires in_channels == out_channels, stride=1"

    wdw, bdw, wpw, bpw = _fold_params(params, pw_dtype)

    # Lane-dense channel padding (unmasked stores, full MXU columns).
    Cp, Op = _round_up(C, LANE), _round_up(O, LANE)
    pw_itemsize = jnp.dtype(pw_dtype).itemsize

    phys = _physical_vmem_bytes()
    budget = phys // 2                                     # picker working-set budget
    vmem_limit = int(min(phys - (8 << 20), budget + (16 << 20)))

    TH = _pick_row_tile(H, W, Cp, Op, budget, pw_itemsize)
    Hp = _round_up(H, TH)                                  # zero-pad rows == SAME pad
    nrows = Hp // TH

    if (Hp, Cp) != (H, C):
        x = jnp.pad(x, ((0, 0), (0, Hp - H), (0, 0), (0, Cp - C)))
    if Cp != C:
        wdw = jnp.pad(wdw, ((0, 0), (0, 0), (0, Cp - C)))
        bdw = jnp.pad(bdw, ((0, Cp - C),))
    if (Cp, Op) != (C, O):
        wpw = jnp.pad(wpw, ((0, Cp - C), (0, Op - O)))
        bpw = jnp.pad(bpw, ((0, Op - O),))

    main_spec = pl.BlockSpec((1, TH, W, Cp), lambda n, r: (n, r, 0, 0))
    # 1-row halo views of the same input; index maps clamp at the image border
    # (clamped rows are overwritten with zeros inside the kernel).
    top_spec = pl.BlockSpec(
        (1, 1, W, Cp), lambda n, r: (n, jnp.maximum(r * TH - 1, 0), 0, 0))
    bot_spec = pl.BlockSpec(
        (1, 1, W, Cp), lambda n, r: (n, jnp.minimum(r * TH + TH, Hp - 1), 0, 0))

    def bcast(shape):
        return pl.BlockSpec(shape, lambda n, r: (0,) * len(shape))

    out = pl.pallas_call(
        _fused_kernel,
        out_shape=jax.ShapeDtypeStruct((N, Hp, W, Op), jnp.float32),
        grid=(N, nrows),
        in_specs=[main_spec, top_spec, bot_spec,
                  bcast((3, 3, Cp)), bcast((1, Cp)),
                  bcast((Cp, Op)), bcast((1, Op))],
        out_specs=pl.BlockSpec((1, TH, W, Op), lambda n, r: (n, r, 0, 0)),
        scratch_shapes=[pltpu.VMEM((TH + 2, W + 2, Cp), jnp.float32)],
        compiler_params=pltpu.CompilerParams(
            dimension_semantics=("parallel", "parallel"),
            vmem_limit_bytes=vmem_limit),
    )(x, x, x, wdw, bdw.reshape(1, Cp), wpw, bpw.reshape(1, Op))

    if (Hp, Op) != (H, O):
        out = out[:, :H, :, :O]
    return out


def mobileone_block_pallas(x_nchw, params, *, pw_dtype=jnp.bfloat16):
    """PyTorch-layout wrapper: NCHW in / NCHW out."""
    # TODO(synk): in an end-to-end NHWC model call mobileone_block_pallas_nhwc
    # directly and drop these two transposes (each is an extra HBM round trip).
    x = jnp.transpose(x_nchw, (0, 2, 3, 1)).astype(jnp.float32)
    out = mobileone_block_pallas_nhwc(x, params, pw_dtype=pw_dtype)
    return jnp.transpose(out, (0, 3, 1, 2))


# ----------------------------------------------------------------------------
# Deterministic parameter construction (shapes mirror the PyTorch __init__),
# with eval-mode BN folded per branch (branches are only summed in the wrapper).
# ----------------------------------------------------------------------------
def make_params(key, C, O, K):
    keys = iter(jax.random.split(key, 64))

    def nrm(shape, scale=0.5):
        return scale * jax.random.normal(next(keys), shape, jnp.float32)

    def pos(shape):
        return jax.random.uniform(next(keys), shape, jnp.float32, 0.5, 1.5)

    # depthwise 3x3 Conv+BN branches (torch conv weight: (C, 1, 3, 3))
    wdw_f, bdw_f = [], []
    for _ in range(K):
        w = nrm((C, 1, 3, 3))
        gamma, beta, mean, var = pos((C,)), nrm((C,)), nrm((C,)), pos((C,))
        scale = gamma / jnp.sqrt(var + EPS)
        wf = (w * scale[:, None, None, None])[:, 0]           # (C, 3, 3)
        wdw_f.append(jnp.transpose(wf, (1, 2, 0)))            # (3, 3, C)
        bdw_f.append(beta - mean * scale)
    wdw_f = jnp.stack(wdw_f)                                   # (K, 3, 3, C)
    bdw_f = jnp.stack(bdw_f)                                   # (K, C)

    # depthwise 1x1 Conv+BN branch (torch conv weight: (C, 1, 1, 1))
    w1 = nrm((C, 1, 1, 1))[:, 0, 0, 0]
    gamma, beta, mean, var = pos((C,)), nrm((C,)), nrm((C,)), pos((C,))
    scale = gamma / jnp.sqrt(var + EPS)
    s1x1 = w1 * scale
    t1x1 = beta - mean * scale

    # bn1 identity branch
    gamma, beta, mean, var = pos((C,)), nrm((C,)), nrm((C,)), pos((C,))
    sb1 = gamma / jnp.sqrt(var + EPS)
    tb1 = beta - mean * sb1

    # pointwise 1x1 Conv+BN branches (torch conv weight: (O, C, 1, 1))
    wpw_f, bpw_f = [], []
    for _ in range(K):
        w = nrm((O, C, 1, 1))[:, :, 0, 0]                      # (O, C)
        gamma, beta, mean, var = pos((O,)), nrm((O,)), nrm((O,)), pos((O,))
        scale = gamma / jnp.sqrt(var + EPS)
        wpw_f.append(jnp.transpose(w * scale[:, None], (1, 0)))   # (C, O)
        bpw_f.append(beta - mean * scale)
    wpw_f = jnp.stack(wpw_f)                                   # (K, C, O)
    bpw_f = jnp.stack(bpw_f)                                   # (K, O)

    # bn2 identity branch
    gamma, beta, mean, var = pos((O,)), nrm((O,)), nrm((O,)), pos((O,))
    sb2 = gamma / jnp.sqrt(var + EPS)
    tb2 = beta - mean * sb2

    return dict(wdw_f=wdw_f, bdw_f=bdw_f, s1x1=s1x1, t1x1=t1x1,
                sb1=sb1, tb1=tb1, wpw_f=wpw_f, bpw_f=bpw_f, sb2=sb2, tb2=tb2)


# ----------------------------------------------------------------------------
# Pure-JAX reference (per-branch, f32, independent of the kernel's folding,
# channel padding, halo handling and shift-and-add conv)
# ----------------------------------------------------------------------------
def mobileone_block_ref(x_nchw, params):
    x = jnp.transpose(x_nchw, (0, 2, 3, 1)).astype(jnp.float32)   # NHWC
    C = x.shape[-1]
    K = params["wdw_f"].shape[0]

    dw = jnp.zeros_like(x)
    for k in range(K):
        rhs = params["wdw_f"][k][:, :, None, :]                   # (3, 3, 1, C)
        y = lax.conv_general_dilated(
            x, rhs, window_strides=(1, 1), padding="SAME",
            dimension_numbers=("NHWC", "HWIO", "NHWC"),
            feature_group_count=C)
        dw = dw + y + params["bdw_f"][k]

    c1 = x * params["s1x1"] + params["t1x1"]
    b1 = x * params["sb1"] + params["tb1"]
    y1 = _hardswish(dw + c1 + b1)

    pw = jnp.zeros(y1.shape[:-1] + (params["wpw_f"].shape[-1],), jnp.float32)
    for k in range(K):
        pw = pw + jnp.einsum("nhwc,co->nhwo", y1, params["wpw_f"][k]) + params["bpw_f"][k]
    b2 = y1 * params["sb2"] + params["tb2"]
    out = _hardswish(pw + b2)
    return jnp.transpose(out, (0, 3, 1, 2))


if __name__ == "__main__":
    key = jax.random.PRNGKey(0)
    kx, kp = jax.random.split(key)

    N, C, H, W = 2, 4, 16, 16          # in_channels == out_channels, stride=1
    O, K_BLOCKS = 4, 4

    x = jax.random.normal(kx, (N, C, H, W), jnp.float32)   # NCHW (PyTorch layout)
    params = make_params(kp, C, O, K_BLOCKS)

    ref = mobileone_block_ref(x, params)

    # Exact-precision path (f32 MXU operands): tight check of the branch folding,
    # stage fusion, lane padding, halo assembly and row tiling.
    out_f32 = jax.block_until_ready(
        mobileone_block_pallas(x, params, pw_dtype=jnp.float32))
    np.testing.assert_allclose(np.asarray(out_f32), np.asarray(ref),
                               atol=1e-3, rtol=1e-3)

    # Default fast path (bf16 MXU operands for the pointwise matmul): looser
    # tolerance only accounts for bf16 quantization of the matmul operands; the
    # structural correctness is already proven by the f32 check above.
    out_bf16 = jax.block_until_ready(mobileone_block_pallas(x, params))
    np.testing.assert_allclose(np.asarray(out_bf16), np.asarray(ref),
                               atol=3e-1, rtol=5e-2)

    print("KERNEL_OK")
</pallas_src>

<mosaic_0001>
module attributes {stable_mosaic.version = 11 : i64} {
  func.func @_fused_kernel(%arg0: i32, %arg1: i32, %arg2: memref<1x16x16x128xf32, #tpu.memory_space<vmem>>, %arg3: memref<1x1x16x128xf32, #tpu.memory_space<vmem>>, %arg4: memref<1x1x16x128xf32, #tpu.memory_space<vmem>>, %arg5: memref<3x3x128xf32, #tpu.memory_space<vmem>>, %arg6: memref<1x128xf32, #tpu.memory_space<vmem>>, %arg7: memref<128x128xf32, #tpu.memory_space<vmem>>, %arg8: memref<1x128xf32, #tpu.memory_space<vmem>>, %arg9: memref<1x16x16x128xf32, #tpu.memory_space<vmem>>, %arg10: memref<18x18x128xf32, #tpu.memory_space<vmem>>) attributes {dimension_semantics = [#tpu.dimension_semantics<parallel>, #tpu.dimension_semantics<parallel>], iteration_bounds = array<i64: 2, 1>, scalar_prefetch = 0 : i64, scratch_operands = 1 : i64, tpu.core_type = #tpu.core_type<tc>, window_params = [{transform_indices = @transform_0, window_bounds = array<i64: 1, 16, 16, 128>}, {transform_indices = @transform_1, window_bounds = array<i64: 1, 1, 16, 128>}, {transform_indices = @transform_2, window_bounds = array<i64: 1, 1, 16, 128>}, {pipeline_mode = #tpu.pipeline_mode<synchronous>, transform_indices = @transform_3, window_bounds = array<i64: 3, 3, 128>}, {pipeline_mode = #tpu.pipeline_mode<synchronous>, transform_indices = @transform_4, window_bounds = array<i64: 1, 128>}, {pipeline_mode = #tpu.pipeline_mode<synchronous>, transform_indices = @transform_5, window_bounds = array<i64: 128, 128>}, {pipeline_mode = #tpu.pipeline_mode<synchronous>, transform_indices = @transform_6, window_bounds = array<i64: 1, 128>}, {transform_indices = @transform_7, window_bounds = array<i64: 1, 16, 16, 128>}]} {
    %cst = arith.constant 0.000000e+00 : f32
    %0 = vector.broadcast %cst : f32 to vector<18x1x128xf32>
    %c0 = arith.constant 0 : index
    %c0_0 = arith.constant 0 : index
    %c0_1 = arith.constant 0 : index
    %1 = vector.load %arg10[%c0, %c0_0, %c0_1] : memref<18x18x128xf32, #tpu.memory_space<vmem>>, vector<18x1x128xf32>
    tpu.vector_store %arg10[%c0, %c0_0, %c0_1], %0 {strides = array<i32>} : memref<18x18x128xf32, #tpu.memory_space<vmem>>, vector<18x1x128xf32>,
    %c0_2 = arith.constant 0 : index
    %c17 = arith.constant 17 : index
    %c0_3 = arith.constant 0 : index
    %2 = vector.load %arg10[%c0_2, %c17, %c0_3] : memref<18x18x128xf32, #tpu.memory_space<vmem>>, vector<18x1x128xf32>
    tpu.vector_store %arg10[%c0_2, %c17, %c0_3], %0 {strides = array<i32>} : memref<18x18x128xf32, #tpu.memory_space<vmem>>, vector<18x1x128xf32>,
    %c0_4 = arith.constant 0 : index
    %c0_5 = arith.constant 0 : index
    %c0_6 = arith.constant 0 : index
    %c0_7 = arith.constant 0 : index
    %3 = vector.load %arg2[%c0_4, %c0_5, %c0_6, %c0_7] : memref<1x16x16x128xf32, #tpu.memory_space<vmem>>, vector<1x16x16x128xf32>
    %4 = vector.shape_cast %3 : vector<1x16x16x128xf32> to vector<16x16x128xf32>
    %c1 = arith.constant 1 : index
    %c1_8 = arith.constant 1 : index
    %c0_9 = arith.constant 0 : index
    %5 = vector.load %arg10[%c1, %c1_8, %c0_9] : memref<18x18x128xf32, #tpu.memory_space<vmem>>, vector<16x16x128xf32>
    tpu.vector_store %arg10[%c1, %c1_8, %c0_9], %4 {strides = array<i32>} : memref<18x18x128xf32, #tpu.memory_space<vmem>>, vector<16x16x128xf32>,
    %c0_i32 = arith.constant 0 : i32
    %6 = arith.cmpi sgt, %arg1, %c0_i32 : i32
    %7 = arith.extui %6 : i1 to i32
    %c0_i32_10 = arith.constant 0 : i32
    %8 = arith.cmpi ne, %7, %c0_i32_10 : i32
    scf.if %8 {
      %c0_65 = arith.constant 0 : index
      %c0_66 = arith.constant 0 : index
      %c0_67 = arith.constant 0 : index
      %c0_68 = arith.constant 0 : index
      %116 = vector.load %arg3[%c0_65, %c0_66, %c0_67, %c0_68] : memref<1x1x16x128xf32, #tpu.memory_space<vmem>>, vector<1x1x16x128xf32>
      %117 = vector.shape_cast %116 : vector<1x1x16x128xf32> to vector<1x16x128xf32>
      %c0_69 = arith.constant 0 : index
      %c1_70 = arith.constant 1 : index
      %c0_71 = arith.constant 0 : index
      %118 = vector.load %arg10[%c0_69, %c1_70, %c0_71] : memref<18x18x128xf32, #tpu.memory_space<vmem>>, vector<1x16x128xf32>
      tpu.vector_store %arg10[%c0_69, %c1_70, %c0_71], %117 {strides = array<i32>} : memref<18x18x128xf32, #tpu.memory_space<vmem>>, vector<1x16x128xf32>,
    } else {
    }
    %c0_i32_11 = arith.constant 0 : i32
    %9 = arith.cmpi eq, %arg1, %c0_i32_11 : i32
    %10 = arith.extui %9 : i1 to i32
    %c0_i32_12 = arith.constant 0 : i32
    %11 = arith.cmpi ne, %10, %c0_i32_12 : i32
    scf.if %11 {
      %cst_65 = arith.constant 0.000000e+00 : f32
      %116 = vector.broadcast %cst_65 : f32 to vector<1x16x128xf32>
      %c0_66 = arith.constant 0 : index
      %c1_67 = arith.constant 1 : index
      %c0_68 = arith.constant 0 : index
      %117 = vector.load %arg10[%c0_66, %c1_67, %c0_68] : memref<18x18x128xf32, #tpu.memory_space<vmem>>, vector<1x16x128xf32>
      tpu.vector_store %arg10[%c0_66, %c1_67, %c0_68], %116 {strides = array<i32>} : memref<18x18x128xf32, #tpu.memory_space<vmem>>, vector<1x16x128xf32>,
    } else {
    }
    %c0_i32_13 = arith.constant 0 : i32
    %12 = arith.cmpi slt, %arg1, %c0_i32_13 : i32
    %13 = arith.extui %12 : i1 to i32
    %c0_i32_14 = arith.constant 0 : i32
    %14 = arith.cmpi ne, %13, %c0_i32_14 : i32
    scf.if %14 {
      %c0_65 = arith.constant 0 : index
      %c0_66 = arith.constant 0 : index
      %c0_67 = arith.constant 0 : index
      %c0_68 = arith.constant 0 : index
      %116 = vector.load %arg4[%c0_65, %c0_66, %c0_67, %c0_68] : memref<1x1x16x128xf32, #tpu.memory_space<vmem>>, vector<1x1x16x128xf32>
      %117 = vector.shape_cast %116 : vector<1x1x16x128xf32> to vector<1x16x128xf32>
      %c17_69 = arith.constant 17 : index
      %c1_70 = arith.constant 1 : index
      %c0_71 = arith.constant 0 : index
      %118 = vector.load %arg10[%c17_69, %c1_70, %c0_71] : memref<18x18x128xf32, #tpu.memory_space<vmem>>, vector<1x16x128xf32>
      tpu.vector_store %arg10[%c17_69, %c1_70, %c0_71], %117 {strides = array<i32>} : memref<18x18x128xf32, #tpu.memory_space<vmem>>, vector<1x16x128xf32>,
    } else {
    }
    %c0_i32_15 = arith.constant 0 : i32
    %15 = arith.cmpi eq, %arg1, %c0_i32_15 : i32
    %16 = arith.extui %15 : i1 to i32
    %c0_i32_16 = arith.constant 0 : i32
    %17 = arith.cmpi ne, %16, %c0_i32_16 : i32
    scf.if %17 {
      %cst_65 = arith.constant 0.000000e+00 : f32
      %116 = vector.broadcast %cst_65 : f32 to vector<1x16x128xf32>
      %c17_66 = arith.constant 17 : index
      %c1_67 = arith.constant 1 : index
      %c0_68 = arith.constant 0 : index
      %117 = vector.load %arg10[%c17_66, %c1_67, %c0_68] : memref<18x18x128xf32, #tpu.memory_space<vmem>>, vector<1x16x128xf32>
      tpu.vector_store %arg10[%c17_66, %c1_67, %c0_68], %116 {strides = array<i32>} : memref<18x18x128xf32, #tpu.memory_space<vmem>>, vector<1x16x128xf32>,
    } else {
    }
    %c0_17 = arith.constant 0 : index
    %c0_18 = arith.constant 0 : index
    %c0_19 = arith.constant 0 : index
    %18 = vector.load %arg5[%c0_17, %c0_18, %c0_19] : memref<3x3x128xf32, #tpu.memory_space<vmem>>, vector<3x3x128xf32>
    %c0_20 = arith.constant 0 : index
    %c0_21 = arith.constant 0 : index
    %19 = vector.load %arg6[%c0_20, %c0_21] : memref<1x128xf32, #tpu.memory_space<vmem>>, vector<1x128xf32>
    %20 = vector.shape_cast %19 : vector<1x128xf32> to vector<128xf32>
    %21 = vector.shape_cast %20 : vector<128xf32> to vector<1x1x128xf32>
    %22 = vector.broadcast %21 : vector<1x1x128xf32> to vector<16x16x128xf32>
    %c0_22 = arith.constant 0 : index
    %c0_23 = arith.constant 0 : index
    %c0_24 = arith.constant 0 : index
    %23 = vector.load %arg10[%c0_22, %c0_23, %c0_24] : memref<18x18x128xf32, #tpu.memory_space<vmem>>, vector<16x16x128xf32>
    %24 = vector.extract_strided_slice %18 {offsets = [0, 0, 0], sizes = [1, 1, 128], strides = [1, 1, 1]} : vector<3x3x128xf32> to vector<1x1x128xf32>
    %25 = vector.shape_cast %24 : vector<1x1x128xf32> to vector<128xf32>
    %26 = vector.shape_cast %25 : vector<128xf32> to vector<1x1x128xf32>
    %27 = vector.broadcast %26 : vector<1x1x128xf32> to vector<16x16x128xf32>
    %28 = arith.mulf %23, %27 : vector<16x16x128xf32>
    %29 = arith.addf %22, %28 : vector<16x16x128xf32>
    %c0_25 = arith.constant 0 : index
    %c1_26 = arith.constant 1 : index
    %c0_27 = arith.constant 0 : index
    %30 = vector.load %arg10[%c0_25, %c1_26, %c0_27] : memref<18x18x128xf32, #tpu.memory_space<vmem>>, vector<16x16x128xf32>
    %31 = vector.extract_strided_slice %18 {offsets = [0, 1, 0], sizes = [1, 1, 128], strides = [1, 1, 1]} : vector<3x3x128xf32> to vector<1x1x128xf32>
    %32 = vector.shape_cast %31 : vector<1x1x128xf32> to vector<128xf32>
    %33 = vector.shape_cast %32 : vector<128xf32> to vector<1x1x128xf32>
    %34 = vector.broadcast %33 : vector<1x1x128xf32> to vector<16x16x128xf32>
    %35 = arith.mulf %30, %34 : vector<16x16x128xf32>
    %36 = arith.addf %29, %35 : vector<16x16x128xf32>
    %c0_28 = arith.constant 0 : index
    %c2 = arith.constant 2 : index
    %c0_29 = arith.constant 0 : index
    %37 = vector.load %arg10[%c0_28, %c2, %c0_29] : memref<18x18x128xf32, #tpu.memory_space<vmem>>, vector<16x16x128xf32>
    %38 = vector.extract_strided_slice %18 {offsets = [0, 2, 0], sizes = [1, 1, 128], strides = [1, 1, 1]} : vector<3x3x128xf32> to vector<1x1x128xf32>
    %39 = vector.shape_cast %38 : vector<1x1x128xf32> to vector<128xf32>
    %40 = vector.shape_cast %39 : vector<128xf32> to vector<1x1x128xf32>
    %41 = vector.broadcast %40 : vector<1x1x128xf32> to vector<16x16x128xf32>
    %42 = arith.mulf %37, %41 : vector<16x16x128xf32>
    %43 = arith.addf %36, %42 : vector<16x16x128xf32>
    %c1_30 = arith.constant 1 : index
    %c0_31 = arith.constant 0 : index
    %c0_32 = arith.constant 0 : index
    %44 = vector.load %arg10[%c1_30, %c0_31, %c0_32] : memref<18x18x128xf32, #tpu.memory_space<vmem>>, vector<16x16x128xf32>
    %45 = vector.extract_strided_slice %18 {offsets = [1, 0, 0], sizes = [1, 1, 128], strides = [1, 1, 1]} : vector<3x3x128xf32> to vector<1x1x128xf32>
    %46 = vector.shape_cast %45 : vector<1x1x128xf32> to vector<128xf32>
    %47 = vector.shape_cast %46 : vector<128xf32> to vector<1x1x128xf32>
    %48 = vector.broadcast %47 : vector<1x1x128xf32> to vector<16x16x128xf32>
    %49 = arith.mulf %44, %48 : vector<16x16x128xf32>
    %50 = arith.addf %43, %49 : vector<16x16x128xf32>
    %c1_33 = arith.constant 1 : index
    %c1_34 = arith.constant 1 : index
    %c0_35 = arith.constant 0 : index
    %51 = vector.load %arg10[%c1_33, %c1_34, %c0_35] : memref<18x18x128xf32, #tpu.memory_space<vmem>>, vector<16x16x128xf32>
    %52 = vector.extract_strided_slice %18 {offsets = [1, 1, 0], sizes = [1, 1, 128], strides = [1, 1, 1]} : vector<3x3x128xf32> to vector<1x1x128xf32>
    %53 = vector.shape_cast %52 : vector<1x1x128xf32> to vector<128xf32>
    %54 = vector.shape_cast %53 : vector<128xf32> to vector<1x1x128xf32>
    %55 = vector.broadcast %54 : vector<1x1x128xf32> to vector<16x16x128xf32>
    %56 = arith.mulf %51, %55 : vector<16x16x128xf32>
    %57 = arith.addf %50, %56 : vector<16x16x128xf32>
    %c1_36 = arith.constant 1 : index
    %c2_37 = arith.constant 2 : index
    %c0_38 = arith.constant 0 : index
    %58 = vector.load %arg10[%c1_36, %c2_37, %c0_38] : memref<18x18x128xf32, #tpu.memory_space<vmem>>, vector<16x16x128xf32>
    %59 = vector.extract_strided_slice %18 {offsets = [1, 2, 0], sizes = [1, 1, 128], strides = [1, 1, 1]} : vector<3x3x128xf32> to vector<1x1x128xf32>
    %60 = vector.shape_cast %59 : vector<1x1x128xf32> to vector<128xf32>
    %61 = vector.shape_cast %60 : vector<128xf32> to vector<1x1x128xf32>
    %62 = vector.broadcast %61 : vector<1x1x128xf32> to vector<16x16x128xf32>
    %63 = arith.mulf %58, %62 : vector<16x16x128xf32>
    %64 = arith.addf %57, %63 : vector<16x16x128xf32>
    %c2_39 = arith.constant 2 : index
    %c0_40 = arith.constant 0 : index
    %c0_41 = arith.constant 0 : index
    %65 = vector.load %arg10[%c2_39, %c0_40, %c0_41] : memref<18x18x128xf32, #tpu.memory_space<vmem>>, vector<16x16x128xf32>
    %66 = vector.extract_strided_slice %18 {offsets = [2, 0, 0], sizes = [1, 1, 128], strides = [1, 1, 1]} : vector<3x3x128xf32> to vector<1x1x128xf32>
    %67 = vector.shape_cast %66 : vector<1x1x128xf32> to vector<128xf32>
    %68 = vector.shape_cast %67 : vector<128xf32> to vector<1x1x128xf32>
    %69 = vector.broadcast %68 : vector<1x1x128xf32> to vector<16x16x128xf32>
    %70 = arith.mulf %65, %69 : vector<16x16x128xf32>
    %71 = arith.addf %64, %70 : vector<16x16x128xf32>
    %c2_42 = arith.constant 2 : index
    %c1_43 = arith.constant 1 : index
    %c0_44 = arith.constant 0 : index
    %72 = vector.load %arg10[%c2_42, %c1_43, %c0_44] : memref<18x18x128xf32, #tpu.memory_space<vmem>>, vector<16x16x128xf32>
    %73 = vector.extract_strided_slice %18 {offsets = [2, 1, 0], sizes = [1, 1, 128], strides = [1, 1, 1]} : vector<3x3x128xf32> to vector<1x1x128xf32>
    %74 = vector.shape_cast %73 : vector<1x1x128xf32> to vector<128xf32>
    %75 = vector.shape_cast %74 : vector<128xf32> to vector<1x1x128xf32>
    %76 = vector.broadcast %75 : vector<1x1x128xf32> to vector<16x16x128xf32>
    %77 = arith.mulf %72, %76 : vector<16x16x128xf32>
    %78 = arith.addf %71, %77 : vector<16x16x128xf32>
    %c2_45 = arith.constant 2 : index
    %c2_46 = arith.constant 2 : index
    %c0_47 = arith.constant 0 : index
    %79 = vector.load %arg10[%c2_45, %c2_46, %c0_47] : memref<18x18x128xf32, #tpu.memory_space<vmem>>, vector<16x16x128xf32>
    %80 = vector.extract_strided_slice %18 {offsets = [2, 2, 0], sizes = [1, 1, 128], strides = [1, 1, 1]} : vector<3x3x128xf32> to vector<1x1x128xf32>
    %81 = vector.shape_cast %80 : vector<1x1x128xf32> to vector<128xf32>
    %82 = vector.shape_cast %81 : vector<128xf32> to vector<1x1x128xf32>
    %83 = vector.broadcast %82 : vector<1x1x128xf32> to vector<16x16x128xf32>
    %84 = arith.mulf %79, %83 : vector<16x16x128xf32>
    %85 = arith.addf %78, %84 : vector<16x16x128xf32>
    %cst_48 = arith.constant 3.000000e+00 : f32
    %86 = vector.broadcast %cst_48 : f32 to vector<16x16x128xf32>
    %87 = arith.addf %85, %86 : vector<16x16x128xf32>
    %cst_49 = arith.constant 0.000000e+00 : f32
    %cst_50 = arith.constant 6.000000e+00 : f32
    %88 = vector.broadcast %cst_49 : f32 to vector<16x16x128xf32>
    %89 = arith.maximumf %88, %87 : vector<16x16x128xf32>
    %90 = vector.broadcast %cst_50 : f32 to vector<16x16x128xf32>
    %91 = arith.minimumf %90, %89 : vector<16x16x128xf32>
    %92 = arith.mulf %85, %91 : vector<16x16x128xf32>
    %cst_51 = arith.constant 0.166666672 : f32
    %93 = vector.broadcast %cst_51 : f32 to vector<16x16x128xf32>
    %94 = arith.mulf %92, %93 : vector<16x16x128xf32>
    %95 = vector.shape_cast %94 : vector<16x16x128xf32> to vector<256x128xf32>
    %c0_52 = arith.constant 0 : index
    %c0_53 = arith.constant 0 : index
    %96 = vector.load %arg7[%c0_52, %c0_53] : memref<128x128xf32, #tpu.memory_space<vmem>>, vector<128x128xf32>
    %cst_54 = arith.constant dense<0.000000e+00> : vector<256x128xf32>
    %97 = tpu.matmul %95, %96, %cst_54 {dimension_numbers = #tpu.dot_dimension_numbers<[1], [0], [0], [1], [0, 0, 1, 1], [], []>} : vector<256x128xf32>, vector<128x128xf32>, vector<256x128xf32> -> vector<256x128xf32>
    %c0_55 = arith.constant 0 : index
    %c0_56 = arith.constant 0 : index
    %98 = vector.load %arg8[%c0_55, %c0_56] : memref<1x128xf32, #tpu.memory_space<vmem>>, vector<1x128xf32>
    %99 = vector.shape_cast %98 : vector<1x128xf32> to vector<128xf32>
    %100 = vector.shape_cast %99 : vector<128xf32> to vector<1x128xf32>
    %101 = vector.broadcast %100 : vector<1x128xf32> to vector<256x128xf32>
    %102 = arith.addf %97, %101 : vector<256x128xf32>
    %cst_57 = arith.constant 3.000000e+00 : f32
    %103 = vector.broadcast %cst_57 : f32 to vector<256x128xf32>
    %104 = arith.addf %102, %103 : vector<256x128xf32>
    %cst_58 = arith.constant 0.000000e+00 : f32
    %cst_59 = arith.constant 6.000000e+00 : f32
    %105 = vector.broadcast %cst_58 : f32 to vector<256x128xf32>
    %106 = arith.maximumf %105, %104 : vector<256x128xf32>
    %107 = vector.broadcast %cst_59 : f32 to vector<256x128xf32>
    %108 = arith.minimumf %107, %106 : vector<256x128xf32>
    %109 = arith.mulf %102, %108 : vector<256x128xf32>
    %cst_60 = arith.constant 0.166666672 : f32
    %110 = vector.broadcast %cst_60 : f32 to vector<256x128xf32>
    %111 = arith.mulf %109, %110 : vector<256x128xf32>
    %112 = vector.shape_cast %111 : vector<256x128xf32> to vector<16x16x128xf32>
    %c0_61 = arith.constant 0 : index
    %c0_62 = arith.constant 0 : index
    %c0_63 = arith.constant 0 : index
    %c0_64 = arith.constant 0 : index
    %113 = vector.load %arg9[%c0_61, %c0_62, %c0_63, %c0_64] : memref<1x16x16x128xf32, #tpu.memory_space<vmem>>, vector<1x16x16x128xf32>
    %114 = vector.shape_cast %113 : vector<1x16x16x128xf32> to vector<16x16x128xf32>
    %115 = vector.shape_cast %112 : vector<16x16x128xf32> to vector<1x16x16x128xf32>
    tpu.vector_store %arg9[%c0_61, %c0_62, %c0_63, %c0_64], %115 {strides = array<i32>} : memref<1x16x16x128xf32, #tpu.memory_space<vmem>>, vector<1x16x16x128xf32>,
    return
  }
  func.func @transform_0(%arg0: i32, %arg1: i32) -> (i32, i32, i32, i32) {
    %c0_i32 = arith.constant 0 : i32
    %c0_i32_0 = arith.constant 0 : i32
    %c0_i32_1 = arith.constant 0 : i32
    return %arg0, %arg1, %c0_i32, %c0_i32_0 : i32, i32, i32, i32
  }
  func.func @transform_1(%arg0: i32, %arg1: i32) -> (i32, i32, i32, i32) {
    %c16_i32 = arith.constant 16 : i32
    %0 = arith.muli %arg1, %c16_i32 : i32
    %c1_i32 = arith.constant 1 : i32
    %1 = arith.subi %0, %c1_i32 : i32
    %c0_i32 = arith.constant 0 : i32
    %2 = arith.maxsi %1, %c0_i32 : i32
    %c0_i32_0 = arith.constant 0 : i32
    %c0_i32_1 = arith.constant 0 : i32
    %c0_i32_2 = arith.constant 0 : i32
    return %arg0, %2, %c0_i32_0, %c0_i32_1 : i32, i32, i32, i32
  }
  func.func @transform_2(%arg0: i32, %arg1: i32) -> (i32, i32, i32, i32) {
    %c16_i32 = arith.constant 16 : i32
    %0 = arith.muli %arg1, %c16_i32 : i32
    %c16_i32_0 = arith.constant 16 : i32
    %1 = arith.addi %0, %c16_i32_0 : i32
    %c15_i32 = arith.constant 15 : i32
    %2 = arith.minsi %1, %c15_i32 : i32
    %c0_i32 = arith.constant 0 : i32
    %c0_i32_1 = arith.constant 0 : i32
    %c0_i32_2 = arith.constant 0 : i32
    return %arg0, %2, %c0_i32, %c0_i32_1 : i32, i32, i32, i32
  }
  func.func @transform_3(%arg0: i32, %arg1: i32) -> (i32, i32, i32) {
    %c0_i32 = arith.constant 0 : i32
    %c0_i32_0 = arith.constant 0 : i32
    %c0_i32_1 = arith.constant 0 : i32
    %c0_i32_2 = arith.constant 0 : i32
    return %c0_i32, %c0_i32_0, %c0_i32_1 : i32, i32, i32
  }
  func.func @transform_4(%arg0: i32, %arg1: i32) -> (i32, i32) {
    %c0_i32 = arith.constant 0 : i32
    %c0_i32_0 = arith.constant 0 : i32
    %c0_i32_1 = arith.constant 0 : i32
    return %c0_i32, %c0_i32_0 : i32, i32
  }
  func.func @transform_5(%arg0: i32, %arg1: i32) -> (i32, i32) {
    %c0_i32 = arith.constant 0 : i32
    %c0_i32_0 = arith.constant 0 : i32
    %c0_i32_1 = arith.constant 0 : i32
    return %c0_i32, %c0_i32_0 : i32, i32
  }
  func.func @transform_6(%arg0: i32, %arg1: i32) -> (i32, i32) {
    %c0_i32 = arith.constant 0 : i32
    %c0_i32_0 = arith.constant 0 : i32
    %c0_i32_1 = arith.constant 0 : i32
    return %c0_i32, %c0_i32_0 : i32, i32
  }
  func.func @transform_7(%arg0: i32, %arg1: i32) -> (i32, i32, i32, i32) {
    %c0_i32 = arith.constant 0 : i32
    %c0_i32_0 = arith.constant 0 : i32
    %c0_i32_1 = arith.constant 0 : i32
    return %arg0, %arg1, %c0_i32, %c0_i32_0 : i32, i32, i32, i32
  }
}

</mosaic_0001>

<llo_original>
// kernel: tpu_custom_call.1
$region0: #{tpu_custom_call.1}
  #allocation0 [shape = 'u32[]', space=smem, size = 0x4, offset = 0x4, fixed_abs, tag = 'smem constant byte address 0x4 - core index']
  #allocation1 [shape = 'u32[144,128]{1,0:T(1,128)}', space=vmem, size = 0x12000, scoped, tag = 'internal scratch']
  #allocation2 [shape = 'f32[18,18,128]{2,1,0:T(8,128)}', space=vmem, size = 0x36000, scoped, tag = 'scratch operand']
  %s0 = inlined_call_operand.hbm [shape: f32[2,16,16,128], index: 0, kind: input, shape index: {}]
  %s1 = inlined_call_operand.hbm [shape: f32[2,16,16,128], index: 1, kind: input, shape index: {}]
  %s2 = inlined_call_operand.hbm [shape: f32[2,16,16,128], index: 2, kind: input, shape index: {}]
  %s3 = inlined_call_operand.hbm [shape: f32[3,3,128], index: 3, kind: input, shape index: {}]
  %s4 = inlined_call_operand.vmem [shape: f32[1,128], index: 4, kind: input, shape index: {}]
  %s5 = inlined_call_operand.hbm [shape: f32[128,128], index: 5, kind: input, shape index: {}]
  %s6 = inlined_call_operand.vmem [shape: f32[1,128], index: 6, kind: input, shape index: {}]
  %s7 = inlined_call_operand.hbm [shape: f32[2,16,16,128], index: 7, kind: output, shape index: {}]
  %s8 = sld [smem:[#allocation0]]
  $region97: #{tpu_custom_call.1} parent=0
    _
  %s10 = ssub.s32 1, %s8
  %s11 = scalar_select 0, %s10, %s8
  $region1: #{tpu_custom_call.1} parent=0
    #allocation3 [shape = 'u8[262144]{0}', space=vmem, size = 0x40000, scoped, tag = 'input window, operand 0']
    #allocation4 [shape = 's32[2]{0}', space=sflag, size = 0x8, scoped, tag = 'scoped memory for tpu_custom_call.1']
    #allocation5 [shape = 's32[2]{0}', space=sflag, size = 0x8, scoped, tag = 'scoped memory for tpu_custom_call.1']
    #allocation6 [shape = 'u8[16384]{0}', space=vmem, size = 0x4000, scoped, tag = 'input window, operand 1']
    #allocation7 [shape = 's32[2]{0}', space=sflag, size = 0x8, scoped, tag = 'scoped memory for tpu_custom_call.1']
    #allocation8 [shape = 'u8[16384]{0}', space=vmem, size = 0x4000, scoped, tag = 'input window, operand 2']
    #allocation9 [shape = 'u8[6144]{0}', space=vmem, size = 0x1800, scoped, tag = 'input window, operand 3, single buffered']
    #allocation10 [shape = 's32[1]{0}', space=sflag, size = 0x4, scoped, tag = 'scoped memory for tpu_custom_call.1']
    #allocation11 [shape = 'u8[65536]{0}', space=vmem, size = 0x10000, scoped, tag = 'input window, operand 5, single buffered']
    #allocation12 [shape = 'u8[262144]{0}', space=vmem, size = 0x40000, scoped, tag = 'output window, operand 0']
    %12 = vsyncpa [#allocation4], 0
    %s13 = scalar_lea.sflag [#allocation4], 1
    %14 = vsyncpa %s13, 0
    %15 = vsyncpa [#allocation7], 0
    %s16 = scalar_lea.sflag [#allocation7], 1
    %17 = vsyncpa %s16, 0
    %18 = vsyncpa [#allocation10], 0
    %19 = vsyncpa [#allocation5], 0
    %s20 = scalar_lea.sflag [#allocation5], 1
    %21 = vsyncpa %s20, 0
    loop: start=0, step=1, limit=4
    $region2: #{tpu_custom_call.1} parent=1 // loop_pre_header
      _
    $region3: #{tpu_custom_call.1} parent=1 // loop_header
      %s23 = sphi 0, %s27
      %p24 = scmp.ge.s32.totalorder %s23, 4
      %s30 = sphi 0, %s42
      %s31 = sphi 0, %s38
      %s32 = sphi 0, %s30
      %s33 = sphi 0, %s31
      %s34 = sphi 0, %s32
      %s35 = sphi 0, %s33
      %s47 = sphi 0, %s49
      %s50 = sphi 0, %s47
      %s51 = sphi 0, %s50
      %s67 = sphi 0, %s51
      %s83 = sphi 0, %s85
      %s86 = sphi 0, %s83
      %s87 = sphi 0, %s86
      %s103 = sphi 0, %s87
      %s119 = sphi 0, %s121
      %s122 = sphi 0, %s119
      %s123 = sphi 0, %s122
      %s139 = sphi 0, %s123
      %s143 = sphi 0, %s143
      %s145 = sphi 0, %s143
      %s146 = sphi 0, %s145
      %s160 = sphi 0, %s146
      %s164 = sphi 0, %s164
      %s166 = sphi 0, %s164
      %s167 = sphi 0, %s166
      %s181 = sphi 0, %s167
      %s185 = sphi 0, %s185
      %s187 = sphi 0, %s185
      %s188 = sphi 0, %s187
      %s202 = sphi 0, %s188
      %s206 = sphi 0, %s206
      %s208 = sphi 0, %s206
      %s209 = sphi 0, %s208
      %s223 = sphi 0, %s209
      %s231 = sphi 0, %s233
      %s234 = sphi 0, %s231
      %s235 = sphi 0, %s234
      %s251 = sphi 0, %s235
    $region4: #{tpu_custom_call.1} parent=1 // loop_header_branch
      %26 = sbr.rel (%p24) target = $region8
    $region5: #{tpu_custom_call.1} parent=1 // loop_body
      %s28 = ssub.s32 %s23, 1
      %s29 = ssub.s32 %s23, 2
      %s36 = sadd.s32 1, %s31
      %p37 = scmp.ge.s32.totalorder %s36, 1
      %s38 = scalar_select %p37, 0, %s36
      %s39 = sadd.s32 1, %s30
      %s40 = scalar_select %p37, %s39, %s30
      %p41 = scmp.ge.s32.totalorder %s40, 2
      %s42 = scalar_select %p41, 0, %s40
      %s43 = ssub.s32 %s30, %s42
      %s44 = ssub.s32 %s31, %s38
      %s45 = sor.u32 %s43, %s44
      %p46 = scmp.eq.s32.totalorder %s45, 0
      %s48 = sadd.s32 %s47, 1
      %s49 = scalar_select %p46, %s47, %s48
      %p52 = pneg %p46
      %p53 = scmp.eq.s32.totalorder %s23, 1
      %p54 = por %p52, %p53
      %p55 = scmp.ne.s32.totalorder %s47, %s50
      %p56 = scmp.eq.s32.totalorder %s23, 0
      %p57 = por %p55, %p56
      %p58 = scmp.ne.s32.totalorder %s47, %s50
      %p59 = scmp.eq.s32.totalorder %s28, 1
      %p60 = por %p58, %p59
      %p61 = scmp.ne.s32.totalorder %s50, %s51
      %p62 = scmp.eq.s32.totalorder %s28, 0
      %p63 = por %p61, %p62
      %p64 = scmp.ne.s32.totalorder %s50, %s51
      %p65 = scmp.eq.s32.totalorder %s29, 1
      %p66 = por %p64, %p65
      %p68 = scmp.ne.s32.totalorder %s51, %s67
      %p69 = scmp.eq.s32.totalorder %s29, 0
      %p70 = por %p68, %p69
      %s71 = smul.u32 %s31, 16
      %s72 = ssub.s32 %s71, 1
      %p73 = scmp.gt.s32.totalorder %s72, 0
      %s74 = scalar_select %p73, %s72, 0
      %s75 = smul.u32 %s38, 16
      %s76 = ssub.s32 %s75, 1
      %p77 = scmp.gt.s32.totalorder %s76, 0
      %s78 = scalar_select %p77, %s76, 0
      %s79 = ssub.s32 %s30, %s42
      %s80 = ssub.s32 %s74, %s78
      %s81 = sor.u32 %s79, %s80
      %p82 = scmp.eq.s32.totalorder %s81, 0
      %s84 = sadd.s32 %s83, 1
      %s85 = scalar_select %p82, %s83, %s84
      %p88 = pneg %p82
      %p89 = scmp.eq.s32.totalorder %s23, 1
      %p90 = por %p88, %p89
      %p91 = scmp.ne.s32.totalorder %s83, %s86
      %p92 = scmp.eq.s32.totalorder %s23, 0
      %p93 = por %p91, %p92
      %p94 = scmp.ne.s32.totalorder %s83, %s86
      %p95 = scmp.eq.s32.totalorder %s28, 1
      %p96 = por %p94, %p95
      %p97 = scmp.ne.s32.totalorder %s86, %s87
      %p98 = scmp.eq.s32.totalorder %s28, 0
      %p99 = por %p97, %p98
      %p100 = scmp.ne.s32.totalorder %s86, %s87
      %p101 = scmp.eq.s32.totalorder %s29, 1
      %p102 = por %p100, %p101
      %p104 = scmp.ne.s32.totalorder %s87, %s103
      %p105 = scmp.eq.s32.totalorder %s29, 0
      %p106 = por %p104, %p105
      %s107 = smul.u32 %s31, 16
      %s108 = sadd.s32 %s107, 16
      %p109 = scmp.lt.s32.totalorder %s108, 15
      %s110 = scalar_select %p109, %s108, 15
      %s111 = smul.u32 %s38, 16
      %s112 = sadd.s32 %s111, 16
      %p113 = scmp.lt.s32.totalorder %s112, 15
      %s114 = scalar_select %p113, %s112, 15
      %s115 = ssub.s32 %s30, %s42
      %s116 = ssub.s32 %s110, %s114
      %s117 = sor.u32 %s115, %s116
      %p118 = scmp.eq.s32.totalorder %s117, 0
      %s120 = sadd.s32 %s119, 1
      %s121 = scalar_select %p118, %s119, %s120
      %p124 = pneg %p118
      %p125 = scmp.eq.s32.totalorder %s23, 1
      %p126 = por %p124, %p125
      %p127 = scmp.ne.s32.totalorder %s119, %s122
      %p128 = scmp.eq.s32.totalorder %s23, 0
      %p129 = por %p127, %p128
      %p130 = scmp.ne.s32.totalorder %s119, %s122
      %p131 = scmp.eq.s32.totalorder %s28, 1
      %p132 = por %p130, %p131
      %p133 = scmp.ne.s32.totalorder %s122, %s123
      %p134 = scmp.eq.s32.totalorder %s28, 0
      %p135 = por %p133, %p134
      %p136 = scmp.ne.s32.totalorder %s122, %s123
      %p137 = scmp.eq.s32.totalorder %s29, 1
      %p138 = por %p136, %p137
      %p140 = scmp.ne.s32.totalorder %s123, %s139
      %p141 = scmp.eq.s32.totalorder %s29, 0
      %p142 = por %p140, %p141
      %s144 = sadd.s32 %s143, 1
      %p147 = scmp.eq.s32.totalorder %s23, 1
      %p148 = scmp.ne.s32.totalorder %s143, %s145
      %p149 = scmp.eq.s32.totalorder %s23, 0
      %p150 = por %p148, %p149
      %p151 = scmp.ne.s32.totalorder %s143, %s145
      %p152 = scmp.eq.s32.totalorder %s28, 1
      %p153 = por %p151, %p152
      %p154 = scmp.ne.s32.totalorder %s145, %s146
      %p155 = scmp.eq.s32.totalorder %s28, 0
      %p156 = por %p154, %p155
      %p157 = scmp.ne.s32.totalorder %s145, %s146
      %p158 = scmp.eq.s32.totalorder %s29, 1
      %p159 = por %p157, %p158
      %p161 = scmp.ne.s32.totalorder %s146, %s160
      %p162 = scmp.eq.s32.totalorder %s29, 0
      %p163 = por %p161, %p162
      %s165 = sadd.s32 %s164, 1
      %p168 = scmp.eq.s32.totalorder %s23, 1
      %p169 = scmp.ne.s32.totalorder %s164, %s166
      %p170 = scmp.eq.s32.totalorder %s23, 0
      %p171 = por %p169, %p170
      %p172 = scmp.ne.s32.totalorder %s164, %s166
      %p173 = scmp.eq.s32.totalorder %s28, 1
      %p174 = por %p172, %p173
      %p175 = scmp.ne.s32.totalorder %s166, %s167
      %p176 = scmp.eq.s32.totalorder %s28, 0
      %p177 = por %p175, %p176
      %p178 = scmp.ne.s32.totalorder %s166, %s167
      %p179 = scmp.eq.s32.totalorder %s29, 1
      %p180 = por %p178, %p179
      %p182 = scmp.ne.s32.totalorder %s167, %s181
      %p183 = scmp.eq.s32.totalorder %s29, 0
      %p184 = por %p182, %p183
      %s186 = sadd.s32 %s185, 1
      %p189 = scmp.eq.s32.totalorder %s23, 1
      %p190 = scmp.ne.s32.totalorder %s185, %s187
      %p191 = scmp.eq.s32.totalorder %s23, 0
      %p192 = por %p190, %p191
      %p193 = scmp.ne.s32.totalorder %s185, %s187
      %p194 = scmp.eq.s32.totalorder %s28, 1
      %p195 = por %p193, %p194
      %p196 = scmp.ne.s32.totalorder %s187, %s188
      %p197 = scmp.eq.s32.totalorder %s28, 0
      %p198 = por %p196, %p197
      %p199 = scmp.ne.s32.totalorder %s187, %s188
      %p200 = scmp.eq.s32.totalorder %s29, 1
      %p201 = por %p199, %p200
      %p203 = scmp.ne.s32.totalorder %s188, %s202
      %p204 = scmp.eq.s32.totalorder %s29, 0
      %p205 = por %p203, %p204
      %s207 = sadd.s32 %s206, 1
      %p210 = scmp.eq.s32.totalorder %s23, 1
      %p211 = scmp.ne.s32.totalorder %s206, %s208
      %p212 = scmp.eq.s32.totalorder %s23, 0
      %p213 = por %p211, %p212
      %p214 = scmp.ne.s32.totalorder %s206, %s208
      %p215 = scmp.eq.s32.totalorder %s28, 1
      %p216 = por %p214, %p215
      %p217 = scmp.ne.s32.totalorder %s208, %s209
      %p218 = scmp.eq.s32.totalorder %s28, 0
      %p219 = por %p217, %p218
      %p220 = scmp.ne.s32.totalorder %s208, %s209
      %p221 = scmp.eq.s32.totalorder %s29, 1
      %p222 = por %p220, %p221
      %p224 = scmp.ne.s32.totalorder %s209, %s223
      %p225 = scmp.eq.s32.totalorder %s29, 0
      %p226 = por %p224, %p225
      %s227 = ssub.s32 %s30, %s42
      %s228 = ssub.s32 %s31, %s38
      %s229 = sor.u32 %s227, %s228
      %p230 = scmp.eq.s32.totalorder %s229, 0
      %s232 = sadd.s32 %s231, 1
      %s233 = scalar_select %p230, %s231, %s232
      %p236 = pneg %p230
      %p237 = scmp.eq.s32.totalorder %s23, 1
      %p238 = por %p236, %p237
      %p239 = scmp.ne.s32.totalorder %s231, %s234
      %p240 = scmp.eq.s32.totalorder %s23, 0
      %p241 = por %p239, %p240
      %p242 = scmp.ne.s32.totalorder %s231, %s234
      %p243 = scmp.eq.s32.totalorder %s28, 1
      %p244 = por %p242, %p243
      %p245 = scmp.ne.s32.totalorder %s234, %s235
      %p246 = scmp.eq.s32.totalorder %s28, 0
      %p247 = por %p245, %p246
      %p248 = scmp.ne.s32.totalorder %s234, %s235
      %p249 = scmp.eq.s32.totalorder %s29, 1
      %p250 = por %p248, %p249
      %p252 = scmp.ne.s32.totalorder %s235, %s251
      %p253 = scmp.eq.s32.totalorder %s29, 0
      %p254 = por %p252, %p253
      %p255 = scmp.le.s32.totalorder 1, %s23
      %p256 = scmp.lt.s32.totalorder %s23, 3
      %p257 = pnand %p255, %p256
      %p258 = pneg %p257
      // Predicated region
      $region9: #{tpu_custom_call.1} parent=5 // pred_check
        _
      $region10: #{tpu_custom_call.1} parent=5 // pred_check_branch
        %260 = sbr.rel (%p257) target = $region12
      $region11: #{tpu_custom_call.1} parent=5 // pred_region
        %s261 = ssub.s32 %s23, 1
        // Predicated region
        $region13: #{tpu_custom_call.1} parent=11 // pred_check
          %p262 = pneg %p156
        $region14: #{tpu_custom_call.1} parent=11 // pred_check_branch
          %264 = sbr.rel (%p262) target = $region16
        $region15: #{tpu_custom_call.1} parent=11 // pred_region
          %s266 = ssub.s32 192, 192
          %267 = vsyncadd [#allocation10], %s266
          %s268 = sshll.u32 [#allocation9], 4
          %s269 = int_to_ptr.vmem [resolvable:$true] %s268
          %274 = dma.hbm_to_vmem [thread:$0]  %s3, 192, %s269, [#allocation10], 64, 64, 4
        $region16: #{tpu_custom_call.1} parent=11 // pred_fallthru
          _
        // Predicated region
        $region17: #{tpu_custom_call.1} parent=11 // pred_check
          %p275 = pneg %p177
        $region18: #{tpu_custom_call.1} parent=11 // pred_check_branch
          %277 = sbr.rel (%p275) target = $region20
        $region19: #{tpu_custom_call.1} parent=11 // pred_region
          _
        $region20: #{tpu_custom_call.1} parent=11 // pred_fallthru
          _
        // Predicated region
        $region21: #{tpu_custom_call.1} parent=11 // pred_check
          %p278 = pneg %p198
        $region22: #{tpu_custom_call.1} parent=11 // pred_check_branch
          %280 = sbr.rel (%p278) target = $region24
        $region23: #{tpu_custom_call.1} parent=11 // pred_region
          %s282 = ssub.s32 2048, 2048
          %283 = vsyncadd [#allocation10], %s282
          %s284 = sshll.u32 [#allocation11], 4
          %s285 = int_to_ptr.vmem [resolvable:$true] %s284
          %290 = dma.hbm_to_vmem [thread:$0]  %s5, 2048, %s285, [#allocation10], 128, 128, 8
        $region24: #{tpu_custom_call.1} parent=11 // pred_fallthru
          _
        // Predicated region
        $region25: #{tpu_custom_call.1} parent=11 // pred_check
          %p291 = pneg %p219
        $region26: #{tpu_custom_call.1} parent=11 // pred_check_branch
          %293 = sbr.rel (%p291) target = $region28
        $region27: #{tpu_custom_call.1} parent=11 // pred_region
          _
        $region28: #{tpu_custom_call.1} parent=11 // pred_fallthru
          _
      $region12: #{tpu_custom_call.1} parent=5 // pred_fallthru
        _
      %p294 = scmp.lt.s32.totalorder %s23, 2
      // Predicated region
      $region29: #{tpu_custom_call.1} parent=5 // pred_check
        %p295 = pneg %p294
      $region30: #{tpu_custom_call.1} parent=5 // pred_check_branch
        %297 = sbr.rel (%p295) target = $region32
      $region31: #{tpu_custom_call.1} parent=5 // pred_region
        // Predicated region
        $region33: #{tpu_custom_call.1} parent=31 // pred_check
          %p298 = pneg %p57
        $region34: #{tpu_custom_call.1} parent=31 // pred_check_branch
          %300 = sbr.rel (%p298) target = $region36
        $region35: #{tpu_custom_call.1} parent=31 // pred_region
          %s301 = sand.u32 %s47, 1
          %s302 = scalar_lea.sflag [#allocation4], %s301
          %s303 = sand.u32 %s47, 1
          %s304 = smul.addr %s303, 256
          %s305 = scalar_lea.vmem [#allocation3], %s304
          %s306 = smul.u32 16, %s31
          %s308 = ssub.s32 4096, 4096
          %309 = vsyncadd %s302, %s308
          %s310 = smul.addr %s306, 2
          %s311 = smul.addr %s30, 32
          %s312 = sadd.s32 %s310, %s311
          %s313 = smul.addr %s312, 128
          %s314 = scalar_lea.hbm %s0, %s313
          %s315 = sshll.u32 %s305, 4
          %s316 = int_to_ptr.vmem [resolvable:$true] %s315
          %321 = dma.hbm_to_vmem [thread:$0]  %s314, 4096, %s316, %s302, 128, 128, 8
        $region36: #{tpu_custom_call.1} parent=31 // pred_fallthru
          _
        // Predicated region
        $region37: #{tpu_custom_call.1} parent=31 // pred_check
          %p322 = pneg %p93
        $region38: #{tpu_custom_call.1} parent=31 // pred_check_branch
          %324 = sbr.rel (%p322) target = $region40
        $region39: #{tpu_custom_call.1} parent=31 // pred_region
          %s325 = sand.u32 %s23, 1
          %s326 = scalar_lea.sflag [#allocation7], %s325
          %s327 = sand.u32 %s83, 1
          %s328 = smul.addr %s327, 16
          %s329 = scalar_lea.vmem [#allocation6], %s328
          %s330 = smul.u32 %s31, 16
          %s331 = ssub.s32 %s330, 1
          %p332 = scmp.gt.s32.totalorder %s331, 0
          %s333 = scalar_select %p332, %s331, 0
          %s335 = ssub.s32 256, 256
          %336 = vsyncadd %s326, %s335
          %s337 = smul.addr %s333, 2
          %s338 = smul.addr %s30, 32
          %s339 = sadd.s32 %s337, %s338
          %s340 = smul.addr %s339, 128
          %s341 = scalar_lea.hbm %s1, %s340
          %s342 = sshll.u32 %s329, 4
          %s343 = int_to_ptr.vmem [resolvable:$true] %s342
          %348 = dma.hbm_to_vmem [thread:$0]  %s341, 256, %s343, %s326, 128, 128, 8
        $region40: #{tpu_custom_call.1} parent=31 // pred_fallthru
          _
        // Predicated region
        $region41: #{tpu_custom_call.1} parent=31 // pred_check
          %p349 = pneg %p129
        $region42: #{tpu_custom_call.1} parent=31 // pred_check_branch
          %351 = sbr.rel (%p349) target = $region44
        $region43: #{tpu_custom_call.1} parent=31 // pred_region
          %s352 = sand.u32 %s23, 1
          %s353 = scalar_lea.sflag [#allocation7], %s352
          %s354 = sand.u32 %s119, 1
          %s355 = smul.addr %s354, 16
          %s356 = scalar_lea.vmem [#allocation8], %s355
          %s357 = smul.u32 %s31, 16
          %s358 = sadd.s32 %s357, 16
          %p359 = scmp.lt.s32.totalorder %s358, 15
          %s360 = scalar_select %p359, %s358, 15
          %s362 = ssub.s32 256, 256
          %363 = vsyncadd %s353, %s362
          %s364 = smul.addr %s360, 2
          %s365 = smul.addr %s30, 32
          %s366 = sadd.s32 %s364, %s365
          %s367 = smul.addr %s366, 128
          %s368 = scalar_lea.hbm %s2, %s367
          %s369 = sshll.u32 %s356, 4
          %s370 = int_to_ptr.vmem [resolvable:$true] %s369
          %375 = dma.hbm_to_vmem [thread:$0]  %s368, 256, %s370, %s353, 128, 128, 8
        $region44: #{tpu_custom_call.1} parent=31 // pred_fallthru
          _
      $region32: #{tpu_custom_call.1} parent=5 // pred_fallthru
        _
      %p376 = scmp.le.s32.totalorder 1, %s23
      %p377 = scmp.lt.s32.totalorder %s23, 3
      %p378 = pnand %p376, %p377
      %p379 = pneg %p378
      // Predicated region
      $region45: #{tpu_custom_call.1} parent=5 // pred_check
        _
      $region46: #{tpu_custom_call.1} parent=5 // pred_check_branch
        %381 = sbr.rel (%p378) target = $region48
      $region47: #{tpu_custom_call.1} parent=5 // pred_region
        %s382 = ssub.s32 %s23, 1
        %s383 = sand.u32 %s50, 1
        %s384 = scalar_lea.sflag [#allocation4], %s383
        %s385 = sand.u32 %s50, 1
        %s386 = smul.addr %s385, 256
        %s387 = scalar_lea.vmem [#allocation3], %s386
        // Predicated region
        $region49: #{tpu_custom_call.1} parent=47 // pred_check
          %p388 = pneg %p63
        $region50: #{tpu_custom_call.1} parent=47 // pred_check_branch
          %390 = sbr.rel (%p388) target = $region52
        $region51: #{tpu_custom_call.1} parent=47 // pred_region
          %391 = dma.done %s384, 4096
        $region52: #{tpu_custom_call.1} parent=47 // pred_fallthru
          _
        %s392 = sand.u32 %s28, 1
        %s393 = scalar_lea.sflag [#allocation7], %s392
        %s394 = sand.u32 %s86, 1
        %s395 = smul.addr %s394, 16
        %s396 = scalar_lea.vmem [#allocation6], %s395
        // Predicated region
        $region53: #{tpu_custom_call.1} parent=47 // pred_check
          %p397 = pneg %p99
        $region54: #{tpu_custom_call.1} parent=47 // pred_check_branch
          %399 = sbr.rel (%p397) target = $region56
        $region55: #{tpu_custom_call.1} parent=47 // pred_region
          %400 = dma.done %s393, 256
        $region56: #{tpu_custom_call.1} parent=47 // pred_fallthru
          _
        %s401 = sand.u32 %s28, 1
        %s402 = scalar_lea.sflag [#allocation7], %s401
        %s403 = sand.u32 %s122, 1
        %s404 = smul.addr %s403, 16
        %s405 = scalar_lea.vmem [#allocation8], %s404
        // Predicated region
        $region57: #{tpu_custom_call.1} parent=47 // pred_check
          %p406 = pneg %p135
        $region58: #{tpu_custom_call.1} parent=47 // pred_check_branch
          %408 = sbr.rel (%p406) target = $region60
        $region59: #{tpu_custom_call.1} parent=47 // pred_region
          %409 = dma.done %s402, 256
        $region60: #{tpu_custom_call.1} parent=47 // pred_fallthru
          _
        // Predicated region
        $region61: #{tpu_custom_call.1} parent=47 // pred_check
          %p410 = pneg %p156
        $region62: #{tpu_custom_call.1} parent=47 // pred_check_branch
          %412 = sbr.rel (%p410) target = $region64
        $region63: #{tpu_custom_call.1} parent=47 // pred_region
          %413 = dma.done [#allocation10], 192
        $region64: #{tpu_custom_call.1} parent=47 // pred_fallthru
          _
        // Predicated region
        $region65: #{tpu_custom_call.1} parent=47 // pred_check
          %p414 = pneg %p198
        $region66: #{tpu_custom_call.1} parent=47 // pred_check_branch
          %416 = sbr.rel (%p414) target = $region68
        $region67: #{tpu_custom_call.1} parent=47 // pred_region
          %417 = dma.done [#allocation10], 2048
        $region68: #{tpu_custom_call.1} parent=47 // pred_fallthru
          _
        %s418 = sand.u32 %s50, 1
        %s419 = scalar_lea.sflag [#allocation4], %s418
        %s420 = sand.u32 %s50, 1
        %s421 = smul.addr %s420, 256
        %s422 = scalar_lea.vmem [#allocation3], %s421
        %p423 = pneg %p63
        %p424 = pneg %p60
        %s425 = sand.u32 %s28, 1
        %s426 = scalar_lea.sflag [#allocation7], %s425
        %s427 = sand.u32 %s86, 1
        %s428 = smul.addr %s427, 16
        %s429 = scalar_lea.vmem [#allocation6], %s428
        %p430 = pneg %p99
        %p431 = pneg %p96
        %s432 = sand.u32 %s28, 1
        %s433 = scalar_lea.sflag [#allocation7], %s432
        %s434 = sand.u32 %s122, 1
        %s435 = smul.addr %s434, 16
        %s436 = scalar_lea.vmem [#allocation8], %s435
        %p437 = pneg %p135
        %p438 = pneg %p132
        %p439 = pneg %p156
        %p440 = pneg %p153
        %p441 = pneg %p177
        %p442 = pneg %p174
        %p443 = pneg %p198
        %p444 = pneg %p195
        %p445 = pneg %p219
        %p446 = pneg %p216
        %p447 = pneg %p247
        %p448 = pneg %p244
        %s449 = sand.u32 %s234, 1
        %s450 = scalar_lea.sflag [#allocation5], %s449
        %s451 = sand.u32 %s234, 1
        %s452 = smul.addr %s451, 256
        %s453 = scalar_lea.vmem [#allocation12], %s452
        %s454 = smul.u32 16, %s33
        %s455 = smul.u32 %s33, 16
        %s456 = ssub.s32 %s455, 1
        %p457 = scmp.gt.s32.totalorder %s456, 0
        %s458 = scalar_select %p457, %s456, 0
        %s459 = smul.u32 %s33, 16
        %s460 = sadd.s32 %s459, 16
        %p461 = scmp.lt.s32.totalorder %s460, 15
        %s462 = scalar_select %p461, %s460, 15
        %s463 = smul.u32 16, %s33
        %464 = vst [vmem:[#allocation2] sm:$0x1] 0.0
        %465 = vst [vmem:[#allocation2 + $0x18] sm:$0x1] 0.0
        %466 = vst [vmem:[#allocation2 + $0x30] sm:$0x1] 0.0
        %467 = vst [vmem:[#allocation2 + $0x48] sm:$0x1] 0.0
        %468 = vst [vmem:[#allocation2 + $0x60] sm:$0x1] 0.0
        %469 = vst [vmem:[#allocation2 + $0x78] sm:$0x1] 0.0
        %470 = vst [vmem:[#allocation2 + $0x90] sm:$0x1] 0.0
        %471 = vst [vmem:[#allocation2 + $0xa8] sm:$0x1] 0.0
        %472 = vst [vmem:[#allocation2 + $0xc0] sm:$0x1] 0.0
        %473 = vst [vmem:[#allocation2 + $0xd8] sm:$0x1] 0.0
        %474 = vst [vmem:[#allocation2 + $0xf0] sm:$0x1] 0.0
        %475 = vst [vmem:[#allocation2 + $0x108] sm:$0x1] 0.0
        %476 = vst [vmem:[#allocation2 + $0x120] sm:$0x1] 0.0
        %477 = vst [vmem:[#allocation2 + $0x138] sm:$0x1] 0.0
        %478 = vst [vmem:[#allocation2 + $0x150] sm:$0x1] 0.0
        %479 = vst [vmem:[#allocation2 + $0x168] sm:$0x1] 0.0
        %480 = vst [vmem:[#allocation2 + $0x180] sm:$0x1] 0.0
        %481 = vst [vmem:[#allocation2 + $0x198] sm:$0x1] 0.0
        %482 = vst [vmem:[#allocation2 + $0x11] sm:$0x1] 0.0
        %483 = vst [vmem:[#allocation2 + $0x29] sm:$0x1] 0.0
        %484 = vst [vmem:[#allocation2 + $0x41] sm:$0x1] 0.0
        %485 = vst [vmem:[#allocation2 + $0x59] sm:$0x1] 0.0
        %486 = vst [vmem:[#allocation2 + $0x71] sm:$0x1] 0.0
        %487 = vst [vmem:[#allocation2 + $0x89] sm:$0x1] 0.0
        %488 = vst [vmem:[#allocation2 + $0xa1] sm:$0x1] 0.0
        %489 = vst [vmem:[#allocation2 + $0xb9] sm:$0x1] 0.0
        %490 = vst [vmem:[#allocation2 + $0xd1] sm:$0x1] 0.0
        %491 = vst [vmem:[#allocation2 + $0xe9] sm:$0x1] 0.0
        %492 = vst [vmem:[#allocation2 + $0x101] sm:$0x1] 0.0
        %493 = vst [vmem:[#allocation2 + $0x119] sm:$0x1] 0.0
        %494 = vst [vmem:[#allocation2 + $0x131] sm:$0x1] 0.0
        %495 = vst [vmem:[#allocation2 + $0x149] sm:$0x1] 0.0
        %496 = vst [vmem:[#allocation2 + $0x161] sm:$0x1] 0.0
        %497 = vst [vmem:[#allocation2 + $0x179] sm:$0x1] 0.0
        %498 = vst [vmem:[#allocation2 + $0x191] sm:$0x1] 0.0
        %499 = vst [vmem:[#allocation2 + $0x1a9] sm:$0x1] 0.0
        %v500 = vld [vmem:[%s387] sm:$0xff]
        %v501 = vld [vmem:[%s387 + $0x8] sm:$0xff]
        %v502 = vld [vmem:[%s387 + $0x10] sm:$0xff]
        %v503 = vld [vmem:[%s387 + $0x18] sm:$0xff]
        %v504 = vld [vmem:[%s387 + $0x20] sm:$0xff]
        %v505 = vld [vmem:[%s387 + $0x28] sm:$0xff]
        %v506 = vld [vmem:[%s387 + $0x30] sm:$0xff]
        %v507 = vld [vmem:[%s387 + $0x38] sm:$0xff]
        %v508 = vld [vmem:[%s387 + $0x40] sm:$0xff]
        %v509 = vld [vmem:[%s387 + $0x48] sm:$0xff]
        %v510 = vld [vmem:[%s387 + $0x50] sm:$0xff]
        %v511 = vld [vmem:[%s387 + $0x58] sm:$0xff]
        %v512 = vld [vmem:[%s387 + $0x60] sm:$0xff]
        %v513 = vld [vmem:[%s387 + $0x68] sm:$0xff]
        %v514 = vld [vmem:[%s387 + $0x70] sm:$0xff]
        %v515 = vld [vmem:[%s387 + $0x78] sm:$0xff]
        %v516 = vld [vmem:[%s387 + $0x80] sm:$0xff]
        %v517 = vld [vmem:[%s387 + $0x88] sm:$0xff]
        %v518 = vld [vmem:[%s387 + $0x90] sm:$0xff]
        %v519 = vld [vmem:[%s387 + $0x98] sm:$0xff]
        %v520 = vld [vmem:[%s387 + $0xa0] sm:$0xff]
        %v521 = vld [vmem:[%s387 + $0xa8] sm:$0xff]
        %v522 = vld [vmem:[%s387 + $0xb0] sm:$0xff]
        %v523 = vld [vmem:[%s387 + $0xb8] sm:$0xff]
        %v524 = vld [vmem:[%s387 + $0xc0] sm:$0xff]
        %v525 = vld [vmem:[%s387 + $0xc8] sm:$0xff]
        %v526 = vld [vmem:[%s387 + $0xd0] sm:$0xff]
        %v527 = vld [vmem:[%s387 + $0xd8] sm:$0xff]
        %v528 = vld [vmem:[%s387 + $0xe0] sm:$0xff]
        %v529 = vld [vmem:[%s387 + $0xe8] sm:$0xff]
        %v530 = vld [vmem:[%s387 + $0xf0] sm:$0xff]
        %v531 = vld [vmem:[%s387 + $0xf8] sm:$0xff]
        %s532 = scalar_lea.vmem [#allocation2], 24
        %533 = vst [vmem:[%s532 + $0x1] sm:$0xff] %v500
        %534 = vst [vmem:[%s532 + $0x9] sm:$0xff] %v501
        %535 = vst [vmem:[%s532 + $0x19] sm:$0xff] %v502
        %536 = vst [vmem:[%s532 + $0x21] sm:$0xff] %v503
        %537 = vst [vmem:[%s532 + $0x31] sm:$0xff] %v504
        %538 = vst [vmem:[%s532 + $0x39] sm:$0xff] %v505
        %539 = vst [vmem:[%s532 + $0x49] sm:$0xff] %v506
        %540 = vst [vmem:[%s532 + $0x51] sm:$0xff] %v507
        %541 = vst [vmem:[%s532 + $0x61] sm:$0xff] %v508
        %542 = vst [vmem:[%s532 + $0x69] sm:$0xff] %v509
        %543 = vst [vmem:[%s532 + $0x79] sm:$0xff] %v510
        %544 = vst [vmem:[%s532 + $0x81] sm:$0xff] %v511
        %545 = vst [vmem:[%s532 + $0x91] sm:$0xff] %v512
        %546 = vst [vmem:[%s532 + $0x99] sm:$0xff] %v513
        %547 = vst [vmem:[%s532 + $0xa9] sm:$0xff] %v514
        %548 = vst [vmem:[%s532 + $0xb1] sm:$0xff] %v515
        %549 = vst [vmem:[%s532 + $0xc1] sm:$0xff] %v516
        %550 = vst [vmem:[%s532 + $0xc9] sm:$0xff] %v517
        %551 = vst [vmem:[%s532 + $0xd9] sm:$0xff] %v518
        %552 = vst [vmem:[%s532 + $0xe1] sm:$0xff] %v519
        %553 = vst [vmem:[%s532 + $0xf1] sm:$0xff] %v520
        %554 = vst [vmem:[%s532 + $0xf9] sm:$0xff] %v521
        %555 = vst [vmem:[%s532 + $0x109] sm:$0xff] %v522
        %556 = vst [vmem:[%s532 + $0x111] sm:$0xff] %v523
        %557 = vst [vmem:[%s532 + $0x121] sm:$0xff] %v524
        %558 = vst [vmem:[%s532 + $0x129] sm:$0xff] %v525
        %559 = vst [vmem:[%s532 + $0x139] sm:$0xff] %v526
        %560 = vst [vmem:[%s532 + $0x141] sm:$0xff] %v527
        %561 = vst [vmem:[%s532 + $0x151] sm:$0xff] %v528
        %562 = vst [vmem:[%s532 + $0x159] sm:$0xff] %v529
        %563 = vst [vmem:[%s532 + $0x169] sm:$0xff] %v530
        %564 = vst [vmem:[%s532 + $0x171] sm:$0xff] %v531
        %p565 = scmp.gt.s32.totalorder %s33, 0
        // Predicated region
        $region69: #{tpu_custom_call.1} parent=47 // pred_check
          %p566 = pneg %p565
        $region70: #{tpu_custom_call.1} parent=47 // pred_check_branch
          %568 = sbr.rel (%p566) target = $region72
        $region71: #{tpu_custom_call.1} parent=47 // pred_region
          %v569 = vld [vmem:[%s396] sm:$0xff]
          %v570 = vld [vmem:[%s396 + $0x8] sm:$0xff]
          %571 = vst [vmem:[#allocation2 + $0x1] sm:$0xff] %v569
          %572 = vst [vmem:[#allocation2 + $0x9] sm:$0xff] %v570
        $region72: #{tpu_custom_call.1} parent=47 // pred_fallthru
          _
        %p573 = scmp.eq.s32.totalorder %s33, 0
        // Predicated region
        $region73: #{tpu_custom_call.1} parent=47 // pred_check
          %p574 = pneg %p573
        $region74: #{tpu_custom_call.1} parent=47 // pred_check_branch
          %576 = sbr.rel (%p574) target = $region76
        $region75: #{tpu_custom_call.1} parent=47 // pred_region
          %577 = vst [vmem:[#allocation2 + $0x1] sm:$0xff] 0.0
          %578 = vst [vmem:[#allocation2 + $0x9] sm:$0xff] 0.0
        $region76: #{tpu_custom_call.1} parent=47 // pred_fallthru
          _
        %p579 = scmp.lt.s32.totalorder %s33, 0
        // Predicated region
        $region77: #{tpu_custom_call.1} parent=47 // pred_check
          %p580 = pneg %p579
        $region78: #{tpu_custom_call.1} parent=47 // pred_check_branch
          %582 = sbr.rel (%p580) target = $region80
        $region79: #{tpu_custom_call.1} parent=47 // pred_region
          %v583 = vld [vmem:[%s405] sm:$0xff]
          %v584 = vld [vmem:[%s405 + $0x8] sm:$0xff]
          %s585 = scalar_lea.vmem [#allocation2], 408
          %586 = vst [vmem:[%s585 + $0x1] sm:$0xff] %v583
          %587 = vst [vmem:[%s585 + $0x9] sm:$0xff] %v584
        $region80: #{tpu_custom_call.1} parent=47 // pred_fallthru
          _
        // Predicated region
        $region81: #{tpu_custom_call.1} parent=47 // pred_check
          %p588 = pneg %p573
        $region82: #{tpu_custom_call.1} parent=47 // pred_check_branch
          %590 = sbr.rel (%p588) target = $region84
        $region83: #{tpu_custom_call.1} parent=47 // pred_region
          %s591 = scalar_lea.vmem [#allocation2], 408
          %592 = vst [vmem:[%s591 + $0x1] sm:$0xff] 0.0
          %593 = vst [vmem:[%s591 + $0x9] sm:$0xff] 0.0
        $region84: #{tpu_custom_call.1} parent=47 // pred_fallthru
          _
        %v594 = vld [vmem:[#allocation9] sm:$0x7]
        %v595 = vld [vmem:[#allocation9 + $0x4] sm:$0x7]
        %v596 = vld [vmem:[#allocation9 + $0x8] sm:$0x7]
        %v597 = vld [vmem:[%s4] sm:$0x1]
        %v599 = vlaneseq
        %v600 = vshrl.u32 %v599, 7
        %v601 = vsub.s32 0, %v600
        %v602 = vrot.slane %v597, %v601
        %v604 = vld [vmem:[#allocation2] sm:$0xff]
        %v605 = vld [vmem:[#allocation2 + $0x8] sm:$0xff]
        %v606 = vld [vmem:[#allocation2 + $0x18] sm:$0xff]
        %v607 = vld [vmem:[#allocation2 + $0x20] sm:$0xff]
        %v608 = vld [vmem:[#allocation2 + $0x30] sm:$0xff]
        %v609 = vld [vmem:[#allocation2 + $0x38] sm:$0xff]
        %v610 = vld [vmem:[#allocation2 + $0x48] sm:$0xff]
        %v611 = vld [vmem:[#allocation2 + $0x50] sm:$0xff]
        %v612 = vld [vmem:[#allocation2 + $0x60] sm:$0xff]
        %v613 = vld [vmem:[#allocation2 + $0x68] sm:$0xff]
        %v614 = vld [vmem:[#allocation2 + $0x78] sm:$0xff]
        %v615 = vld [vmem:[#allocation2 + $0x80] sm:$0xff]
        %v616 = vld [vmem:[#allocation2 + $0x90] sm:$0xff]
        %v617 = vld [vmem:[#allocation2 + $0x98] sm:$0xff]
        %v618 = vld [vmem:[#allocation2 + $0xa8] sm:$0xff]
        %v619 = vld [vmem:[#allocation2 + $0xb0] sm:$0xff]
        %v620 = vld [vmem:[#allocation2 + $0xc0] sm:$0xff]
        %v621 = vld [vmem:[#allocation2 + $0xc8] sm:$0xff]
        %v622 = vld [vmem:[#allocation2 + $0xd8] sm:$0xff]
        %v623 = vld [vmem:[#allocation2 + $0xe0] sm:$0xff]
        %v624 = vld [vmem:[#allocation2 + $0xf0] sm:$0xff]
        %v625 = vld [vmem:[#allocation2 + $0xf8] sm:$0xff]
        %v626 = vld [vmem:[#allocation2 + $0x108] sm:$0xff]
        %v627 = vld [vmem:[#allocation2 + $0x110] sm:$0xff]
        %v628 = vld [vmem:[#allocation2 + $0x120] sm:$0xff]
        %v629 = vld [vmem:[#allocation2 + $0x128] sm:$0xff]
        %v630 = vld [vmem:[#allocation2 + $0x138] sm:$0xff]
        %v631 = vld [vmem:[#allocation2 + $0x140] sm:$0xff]
        %v632 = vld [vmem:[#allocation2 + $0x150] sm:$0xff]
        %v633 = vld [vmem:[#allocation2 + $0x158] sm:$0xff]
        %v634 = vld [vmem:[#allocation2 + $0x168] sm:$0xff]
        %v635 = vld [vmem:[#allocation2 + $0x170] sm:$0xff]
        %v636 = vlaneseq
        %v637 = vshrl.u32 %v636, 7
        %v638 = vsub.s32 0, %v637
        %v639 = vrot.slane %v594, %v638
        %v640 = vmul.f32 %v604, %v639
        %v641 = vmul.f32 %v605, %v639
        %v642 = vmul.f32 %v606, %v639
        %v643 = vmul.f32 %v607, %v639
        %v644 = vmul.f32 %v608, %v639
        %v645 = vmul.f32 %v609, %v639
        %v646 = vmul.f32 %v610, %v639
        %v647 = vmul.f32 %v611, %v639
        %v648 = vmul.f32 %v612, %v639
        %v649 = vmul.f32 %v613, %v639
        %v650 = vmul.f32 %v614, %v639
        %v651 = vmul.f32 %v615, %v639
        %v652 = vmul.f32 %v616, %v639
        %v653 = vmul.f32 %v617, %v639
        %v654 = vmul.f32 %v618, %v639
        %v655 = vmul.f32 %v619, %v639
        %v656 = vmul.f32 %v620, %v639
        %v657 = vmul.f32 %v621, %v639
        %v658 = vmul.f32 %v622, %v639
        %v659 = vmul.f32 %v623, %v639
        %v660 = vmul.f32 %v624, %v639
        %v661 = vmul.f32 %v625, %v639
        %v662 = vmul.f32 %v626, %v639
        %v663 = vmul.f32 %v627, %v639
        %v664 = vmul.f32 %v628, %v639
        %v665 = vmul.f32 %v629, %v639
        %v666 = vmul.f32 %v630, %v639
        %v667 = vmul.f32 %v631, %v639
        %v668 = vmul.f32 %v632, %v639
        %v669 = vmul.f32 %v633, %v639
        %v670 = vmul.f32 %v634, %v639
        %v671 = vmul.f32 %v635, %v639
        %v672 = vadd.f32 %v602, %v640
        %v673 = vadd.f32 %v602, %v641
        %v674 = vadd.f32 %v602, %v642
        %v675 = vadd.f32 %v602, %v643
        %v676 = vadd.f32 %v602, %v644
        %v677 = vadd.f32 %v602, %v645
        %v678 = vadd.f32 %v602, %v646
        %v679 = vadd.f32 %v602, %v647
        %v680 = vadd.f32 %v602, %v648
        %v681 = vadd.f32 %v602, %v649
        %v682 = vadd.f32 %v602, %v650
        %v683 = vadd.f32 %v602, %v651
        %v684 = vadd.f32 %v602, %v652
        %v685 = vadd.f32 %v602, %v653
        %v686 = vadd.f32 %v602, %v654
        %v687 = vadd.f32 %v602, %v655
        %v688 = vadd.f32 %v602, %v656
        %v689 = vadd.f32 %v602, %v657
        %v690 = vadd.f32 %v602, %v658
        %v691 = vadd.f32 %v602, %v659
        %v692 = vadd.f32 %v602, %v660
        %v693 = vadd.f32 %v602, %v661
        %v694 = vadd.f32 %v602, %v662
        %v695 = vadd.f32 %v602, %v663
        %v696 = vadd.f32 %v602, %v664
        %v697 = vadd.f32 %v602, %v665
        %v698 = vadd.f32 %v602, %v666
        %v699 = vadd.f32 %v602, %v667
        %v700 = vadd.f32 %v602, %v668
        %v701 = vadd.f32 %v602, %v669
        %v702 = vadd.f32 %v602, %v670
        %v703 = vadd.f32 %v602, %v671
        %v704 = vld [vmem:[#allocation2 + $0x1] sm:$0xff]
        %v705 = vld [vmem:[#allocation2 + $0x9] sm:$0xff]
        %v706 = vld [vmem:[#allocation2 + $0x19] sm:$0xff]
        %v707 = vld [vmem:[#allocation2 + $0x21] sm:$0xff]
        %v708 = vld [vmem:[#allocation2 + $0x31] sm:$0xff]
        %v709 = vld [vmem:[#allocation2 + $0x39] sm:$0xff]
        %v710 = vld [vmem:[#allocation2 + $0x49] sm:$0xff]
        %v711 = vld [vmem:[#allocation2 + $0x51] sm:$0xff]
        %v712 = vld [vmem:[#allocation2 + $0x61] sm:$0xff]
        %v713 = vld [vmem:[#allocation2 + $0x69] sm:$0xff]
        %v714 = vld [vmem:[#allocation2 + $0x79] sm:$0xff]
        %v715 = vld [vmem:[#allocation2 + $0x81] sm:$0xff]
        %v716 = vld [vmem:[#allocation2 + $0x91] sm:$0xff]
        %v717 = vld [vmem:[#allocation2 + $0x99] sm:$0xff]
        %v718 = vld [vmem:[#allocation2 + $0xa9] sm:$0xff]
        %v719 = vld [vmem:[#allocation2 + $0xb1] sm:$0xff]
        %v720 = vld [vmem:[#allocation2 + $0xc1] sm:$0xff]
        %v721 = vld [vmem:[#allocation2 + $0xc9] sm:$0xff]
        %v722 = vld [vmem:[#allocation2 + $0xd9] sm:$0xff]
        %v723 = vld [vmem:[#allocation2 + $0xe1] sm:$0xff]
        %v724 = vld [vmem:[#allocation2 + $0xf1] sm:$0xff]
        %v725 = vld [vmem:[#allocation2 + $0xf9] sm:$0xff]
        %v726 = vld [vmem:[#allocation2 + $0x109] sm:$0xff]
        %v727 = vld [vmem:[#allocation2 + $0x111] sm:$0xff]
        %v728 = vld [vmem:[#allocation2 + $0x121] sm:$0xff]
        %v729 = vld [vmem:[#allocation2 + $0x129] sm:$0xff]
        %v730 = vld [vmem:[#allocation2 + $0x139] sm:$0xff]
        %v731 = vld [vmem:[#allocation2 + $0x141] sm:$0xff]
        %v732 = vld [vmem:[#allocation2 + $0x151] sm:$0xff]
        %v733 = vld [vmem:[#allocation2 + $0x159] sm:$0xff]
        %v734 = vld [vmem:[#allocation2 + $0x169] sm:$0xff]
        %v735 = vld [vmem:[#allocation2 + $0x171] sm:$0xff]
        %v736 = vlaneseq
        %v737 = vshrl.u32 %v736, 7
        %v738 = vsub.s32 1, %v737
        %v739 = vrot.slane %v594, %v738
        %v740 = vmul.f32 %v704, %v739
        %v741 = vmul.f32 %v705, %v739
        %v742 = vmul.f32 %v706, %v739
        %v743 = vmul.f32 %v707, %v739
        %v744 = vmul.f32 %v708, %v739
        %v745 = vmul.f32 %v709, %v739
        %v746 = vmul.f32 %v710, %v739
        %v747 = vmul.f32 %v711, %v739
        %v748 = vmul.f32 %v712, %v739
        %v749 = vmul.f32 %v713, %v739
        %v750 = vmul.f32 %v714, %v739
        %v751 = vmul.f32 %v715, %v739
        %v752 = vmul.f32 %v716, %v739
        %v753 = vmul.f32 %v717, %v739
        %v754 = vmul.f32 %v718, %v739
        %v755 = vmul.f32 %v719, %v739
        %v756 = vmul.f32 %v720, %v739
        %v757 = vmul.f32 %v721, %v739
        %v758 = vmul.f32 %v722, %v739
        %v759 = vmul.f32 %v723, %v739
        %v760 = vmul.f32 %v724, %v739
        %v761 = vmul.f32 %v725, %v739
        %v762 = vmul.f32 %v726, %v739
        %v763 = vmul.f32 %v727, %v739
        %v764 = vmul.f32 %v728, %v739
        %v765 = vmul.f32 %v729, %v739
        %v766 = vmul.f32 %v730, %v739
        %v767 = vmul.f32 %v731, %v739
        %v768 = vmul.f32 %v732, %v739
        %v769 = vmul.f32 %v733, %v739
        %v770 = vmul.f32 %v734, %v739
        %v771 = vmul.f32 %v735, %v739
        %v772 = vadd.f32 %v672, %v740
        %v773 = vadd.f32 %v673, %v741
        %v774 = vadd.f32 %v674, %v742
        %v775 = vadd.f32 %v675, %v743
        %v776 = vadd.f32 %v676, %v744
        %v777 = vadd.f32 %v677, %v745
        %v778 = vadd.f32 %v678, %v746
        %v779 = vadd.f32 %v679, %v747
        %v780 = vadd.f32 %v680, %v748
        %v781 = vadd.f32 %v681, %v749
        %v782 = vadd.f32 %v682, %v750
        %v783 = vadd.f32 %v683, %v751
        %v784 = vadd.f32 %v684, %v752
        %v785 = vadd.f32 %v685, %v753
        %v786 = vadd.f32 %v686, %v754
        %v787 = vadd.f32 %v687, %v755
        %v788 = vadd.f32 %v688, %v756
        %v789 = vadd.f32 %v689, %v757
        %v790 = vadd.f32 %v690, %v758
        %v791 = vadd.f32 %v691, %v759
        %v792 = vadd.f32 %v692, %v760
        %v793 = vadd.f32 %v693, %v761
        %v794 = vadd.f32 %v694, %v762
        %v795 = vadd.f32 %v695, %v763
        %v796 = vadd.f32 %v696, %v764
        %v797 = vadd.f32 %v697, %v765
        %v798 = vadd.f32 %v698, %v766
        %v799 = vadd.f32 %v699, %v767
        %v800 = vadd.f32 %v700, %v768
        %v801 = vadd.f32 %v701, %v769
        %v802 = vadd.f32 %v702, %v770
        %v803 = vadd.f32 %v703, %v771
        %v804 = vld [vmem:[#allocation2 + $0x2] sm:$0xff]
        %v805 = vld [vmem:[#allocation2 + $0xa] sm:$0xff]
        %v806 = vld [vmem:[#allocation2 + $0x1a] sm:$0xff]
        %v807 = vld [vmem:[#allocation2 + $0x22] sm:$0xff]
        %v808 = vld [vmem:[#allocation2 + $0x32] sm:$0xff]
        %v809 = vld [vmem:[#allocation2 + $0x3a] sm:$0xff]
        %v810 = vld [vmem:[#allocation2 + $0x4a] sm:$0xff]
        %v811 = vld [vmem:[#allocation2 + $0x52] sm:$0xff]
        %v812 = vld [vmem:[#allocation2 + $0x62] sm:$0xff]
        %v813 = vld [vmem:[#allocation2 + $0x6a] sm:$0xff]
        %v814 = vld [vmem:[#allocation2 + $0x7a] sm:$0xff]
        %v815 = vld [vmem:[#allocation2 + $0x82] sm:$0xff]
        %v816 = vld [vmem:[#allocation2 + $0x92] sm:$0xff]
        %v817 = vld [vmem:[#allocation2 + $0x9a] sm:$0xff]
        %v818 = vld [vmem:[#allocation2 + $0xaa] sm:$0xff]
        %v819 = vld [vmem:[#allocation2 + $0xb2] sm:$0xff]
        %v820 = vld [vmem:[#allocation2 + $0xc2] sm:$0xff]
        %v821 = vld [vmem:[#allocation2 + $0xca] sm:$0xff]
        %v822 = vld [vmem:[#allocation2 + $0xda] sm:$0xff]
        %v823 = vld [vmem:[#allocation2 + $0xe2] sm:$0xff]
        %v824 = vld [vmem:[#allocation2 + $0xf2] sm:$0xff]
        %v825 = vld [vmem:[#allocation2 + $0xfa] sm:$0xff]
        %v826 = vld [vmem:[#allocation2 + $0x10a] sm:$0xff]
        %v827 = vld [vmem:[#allocation2 + $0x112] sm:$0xff]
        %v828 = vld [vmem:[#allocation2 + $0x122] sm:$0xff]
        %v829 = vld [vmem:[#allocation2 + $0x12a] sm:$0xff]
        %v830 = vld [vmem:[#allocation2 + $0x13a] sm:$0xff]
        %v831 = vld [vmem:[#allocation2 + $0x142] sm:$0xff]
        %v832 = vld [vmem:[#allocation2 + $0x152] sm:$0xff]
        %v833 = vld [vmem:[#allocation2 + $0x15a] sm:$0xff]
        %v834 = vld [vmem:[#allocation2 + $0x16a] sm:$0xff]
        %v835 = vld [vmem:[#allocation2 + $0x172] sm:$0xff]
        %v836 = vlaneseq
        %v837 = vshrl.u32 %v836, 7
        %v838 = vsub.s32 2, %v837
        %v839 = vrot.slane %v594, %v838
        %v840 = vmul.f32 %v804, %v839
        %v841 = vmul.f32 %v805, %v839
        %v842 = vmul.f32 %v806, %v839
        %v843 = vmul.f32 %v807, %v839
        %v844 = vmul.f32 %v808, %v839
        %v845 = vmul.f32 %v809, %v839
        %v846 = vmul.f32 %v810, %v839
        %v847 = vmul.f32 %v811, %v839
        %v848 = vmul.f32 %v812, %v839
        %v849 = vmul.f32 %v813, %v839
        %v850 = vmul.f32 %v814, %v839
        %v851 = vmul.f32 %v815, %v839
        %v852 = vmul.f32 %v816, %v839
        %v853 = vmul.f32 %v817, %v839
        %v854 = vmul.f32 %v818, %v839
        %v855 = vmul.f32 %v819, %v839
        %v856 = vmul.f32 %v820, %v839
        %v857 = vmul.f32 %v821, %v839
        %v858 = vmul.f32 %v822, %v839
        %v859 = vmul.f32 %v823, %v839
        %v860 = vmul.f32 %v824, %v839
        %v861 = vmul.f32 %v825, %v839
        %v862 = vmul.f32 %v826, %v839
        %v863 = vmul.f32 %v827, %v839
        %v864 = vmul.f32 %v828, %v839
        %v865 = vmul.f32 %v829, %v839
        %v866 = vmul.f32 %v830, %v839
        %v867 = vmul.f32 %v831, %v839
        %v868 = vmul.f32 %v832, %v839
        %v869 = vmul.f32 %v833, %v839
        %v870 = vmul.f32 %v834, %v839
        %v871 = vmul.f32 %v835, %v839
        %v872 = vadd.f32 %v772, %v840
        %v873 = vadd.f32 %v773, %v841
        %v874 = vadd.f32 %v774, %v842
        %v875 = vadd.f32 %v775, %v843
        %v876 = vadd.f32 %v776, %v844
        %v877 = vadd.f32 %v777, %v845
        %v878 = vadd.f32 %v778, %v846
        %v879 = vadd.f32 %v779, %v847
        %v880 = vadd.f32 %v780, %v848
        %v881 = vadd.f32 %v781, %v849
        %v882 = vadd.f32 %v782, %v850
        %v883 = vadd.f32 %v783, %v851
        %v884 = vadd.f32 %v784, %v852
        %v885 = vadd.f32 %v785, %v853
        %v886 = vadd.f32 %v786, %v854
        %v887 = vadd.f32 %v787, %v855
        %v888 = vadd.f32 %v788, %v856
        %v889 = vadd.f32 %v789, %v857
        %v890 = vadd.f32 %v790, %v858
        %v891 = vadd.f32 %v791, %v859
        %v892 = vadd.f32 %v792, %v860
        %v893 = vadd.f32 %v793, %v861
        %v894 = vadd.f32 %v794, %v862
        %v895 = vadd.f32 %v795, %v863
        %v896 = vadd.f32 %v796, %v864
        %v897 = vadd.f32 %v797, %v865
        %v898 = vadd.f32 %v798, %v866
        %v899 = vadd.f32 %v799, %v867
        %v900 = vadd.f32 %v800, %v868
        %v901 = vadd.f32 %v801, %v869
        %v902 = vadd.f32 %v802, %v870
        %v903 = vadd.f32 %v803, %v871
        %v904 = vld [vmem:[%s532] sm:$0xff]
        %v905 = vld [vmem:[%s532 + $0x8] sm:$0xff]
        %v906 = vld [vmem:[%s532 + $0x18] sm:$0xff]
        %v907 = vld [vmem:[%s532 + $0x20] sm:$0xff]
        %v908 = vld [vmem:[%s532 + $0x30] sm:$0xff]
        %v909 = vld [vmem:[%s532 + $0x38] sm:$0xff]
        %v910 = vld [vmem:[%s532 + $0x48] sm:$0xff]
        %v911 = vld [vmem:[%s532 + $0x50] sm:$0xff]
        %v912 = vld [vmem:[%s532 + $0x60] sm:$0xff]
        %v913 = vld [vmem:[%s532 + $0x68] sm:$0xff]
        %v914 = vld [vmem:[%s532 + $0x78] sm:$0xff]
        %v915 = vld [vmem:[%s532 + $0x80] sm:$0xff]
        %v916 = vld [vmem:[%s532 + $0x90] sm:$0xff]
        %v917 = vld [vmem:[%s532 + $0x98] sm:$0xff]
        %v918 = vld [vmem:[%s532 + $0xa8] sm:$0xff]
        %v919 = vld [vmem:[%s532 + $0xb0] sm:$0xff]
        %v920 = vld [vmem:[%s532 + $0xc0] sm:$0xff]
        %v921 = vld [vmem:[%s532 + $0xc8] sm:$0xff]
        %v922 = vld [vmem:[%s532 + $0xd8] sm:$0xff]
        %v923 = vld [vmem:[%s532 + $0xe0] sm:$0xff]
        %v924 = vld [vmem:[%s532 + $0xf0] sm:$0xff]
        %v925 = vld [vmem:[%s532 + $0xf8] sm:$0xff]
        %v926 = vld [vmem:[%s532 + $0x108] sm:$0xff]
        %v927 = vld [vmem:[%s532 + $0x110] sm:$0xff]
        %v928 = vld [vmem:[%s532 + $0x120] sm:$0xff]
        %v929 = vld [vmem:[%s532 + $0x128] sm:$0xff]
        %v930 = vld [vmem:[%s532 + $0x138] sm:$0xff]
        %v931 = vld [vmem:[%s532 + $0x140] sm:$0xff]
        %v932 = vld [vmem:[%s532 + $0x150] sm:$0xff]
        %v933 = vld [vmem:[%s532 + $0x158] sm:$0xff]
        %v934 = vld [vmem:[%s532 + $0x168] sm:$0xff]
        %v935 = vld [vmem:[%s532 + $0x170] sm:$0xff]
        %v936 = vlaneseq
        %v937 = vshrl.u32 %v936, 7
        %v938 = vsub.s32 0, %v937
        %v939 = vrot.slane %v595, %v938
        %v940 = vmul.f32 %v904, %v939
        %v941 = vmul.f32 %v905, %v939
        %v942 = vmul.f32 %v906, %v939
        %v943 = vmul.f32 %v907, %v939
        %v944 = vmul.f32 %v908, %v939
        %v945 = vmul.f32 %v909, %v939
        %v946 = vmul.f32 %v910, %v939
        %v947 = vmul.f32 %v911, %v939
        %v948 = vmul.f32 %v912, %v939
        %v949 = vmul.f32 %v913, %v939
        %v950 = vmul.f32 %v914, %v939
        %v951 = vmul.f32 %v915, %v939
        %v952 = vmul.f32 %v916, %v939
        %v953 = vmul.f32 %v917, %v939
        %v954 = vmul.f32 %v918, %v939
        %v955 = vmul.f32 %v919, %v939
        %v956 = vmul.f32 %v920, %v939
        %v957 = vmul.f32 %v921, %v939
        %v958 = vmul.f32 %v922, %v939
        %v959 = vmul.f32 %v923, %v939
        %v960 = vmul.f32 %v924, %v939
        %v961 = vmul.f32 %v925, %v939
        %v962 = vmul.f32 %v926, %v939
        %v963 = vmul.f32 %v927, %v939
        %v964 = vmul.f32 %v928, %v939
        %v965 = vmul.f32 %v929, %v939
        %v966 = vmul.f32 %v930, %v939
        %v967 = vmul.f32 %v931, %v939
        %v968 = vmul.f32 %v932, %v939
        %v969 = vmul.f32 %v933, %v939
        %v970 = vmul.f32 %v934, %v939
        %v971 = vmul.f32 %v935, %v939
        %v972 = vadd.f32 %v872, %v940
        %v973 = vadd.f32 %v873, %v941
        %v974 = vadd.f32 %v874, %v942
        %v975 = vadd.f32 %v875, %v943
        %v976 = vadd.f32 %v876, %v944
        %v977 = vadd.f32 %v877, %v945
        %v978 = vadd.f32 %v878, %v946
        %v979 = vadd.f32 %v879, %v947
        %v980 = vadd.f32 %v880, %v948
        %v981 = vadd.f32 %v881, %v949
        %v982 = vadd.f32 %v882, %v950
        %v983 = vadd.f32 %v883, %v951
        %v984 = vadd.f32 %v884, %v952
        %v985 = vadd.f32 %v885, %v953
        %v986 = vadd.f32 %v886, %v954
        %v987 = vadd.f32 %v887, %v955
        %v988 = vadd.f32 %v888, %v956
        %v989 = vadd.f32 %v889, %v957
        %v990 = vadd.f32 %v890, %v958
        %v991 = vadd.f32 %v891, %v959
        %v992 = vadd.f32 %v892, %v960
        %v993 = vadd.f32 %v893, %v961
        %v994 = vadd.f32 %v894, %v962
        %v995 = vadd.f32 %v895, %v963
        %v996 = vadd.f32 %v896, %v964
        %v997 = vadd.f32 %v897, %v965
        %v998 = vadd.f32 %v898, %v966
        %v999 = vadd.f32 %v899, %v967
        %v1000 = vadd.f32 %v900, %v968
        %v1001 = vadd.f32 %v901, %v969
        %v1002 = vadd.f32 %v902, %v970
        %v1003 = vadd.f32 %v903, %v971
        %v1004 = vld [vmem:[%s532 + $0x1] sm:$0xff]
        %v1005 = vld [vmem:[%s532 + $0x9] sm:$0xff]
        %v1006 = vld [vmem:[%s532 + $0x19] sm:$0xff]
        %v1007 = vld [vmem:[%s532 + $0x21] sm:$0xff]
        %v1008 = vld [vmem:[%s532 + $0x31] sm:$0xff]
        %v1009 = vld [vmem:[%s532 + $0x39] sm:$0xff]
        %v1010 = vld [vmem:[%s532 + $0x49] sm:$0xff]
        %v1011 = vld [vmem:[%s532 + $0x51] sm:$0xff]
        %v1012 = vld [vmem:[%s532 + $0x61] sm:$0xff]
        %v1013 = vld [vmem:[%s532 + $0x69] sm:$0xff]
        %v1014 = vld [vmem:[%s532 + $0x79] sm:$0xff]
        %v1015 = vld [vmem:[%s532 + $0x81] sm:$0xff]
        %v1016 = vld [vmem:[%s532 + $0x91] sm:$0xff]
        %v1017 = vld [vmem:[%s532 + $0x99] sm:$0xff]
        %v1018 = vld [vmem:[%s532 + $0xa9] sm:$0xff]
        %v1019 = vld [vmem:[%s532 + $0xb1] sm:$0xff]
        %v1020 = vld [vmem:[%s532 + $0xc1] sm:$0xff]
        %v1021 = vld [vmem:[%s532 + $0xc9] sm:$0xff]
        %v1022 = vld [vmem:[%s532 + $0xd9] sm:$0xff]
        %v1023 = vld [vmem:[%s532 + $0xe1] sm:$0xff]
        %v1024 = vld [vmem:[%s532 + $0xf1] sm:$0xff]
        %v1025 = vld [vmem:[%s532 + $0xf9] sm:$0xff]
        %v1026 = vld [vmem:[%s532 + $0x109] sm:$0xff]
        %v1027 = vld [vmem:[%s532 + $0x111] sm:$0xff]
        %v1028 = vld [vmem:[%s532 + $0x121] sm:$0xff]
        %v1029 = vld [vmem:[%s532 + $0x129] sm:$0xff]
        %v1030 = vld [vmem:[%s532 + $0x139] sm:$0xff]
        %v1031 = vld [vmem:[%s532 + $0x141] sm:$0xff]
        %v1032 = vld [vmem:[%s532 + $0x151] sm:$0xff]
        %v1033 = vld [vmem:[%s532 + $0x159] sm:$0xff]
        %v1034 = vld [vmem:[%s532 + $0x169] sm:$0xff]
        %v1035 = vld [vmem:[%s532 + $0x171] sm:$0xff]
        %v1036 = vlaneseq
        %v1037 = vshrl.u32 %v1036, 7
        %v1038 = vsub.s32 1, %v1037
        %v1039 = vrot.slane %v595, %v1038
        %v1040 = vmul.f32 %v1004, %v1039
        %v1041 = vmul.f32 %v1005, %v1039
        %v1042 = vmul.f32 %v1006, %v1039
        %v1043 = vmul.f32 %v1007, %v1039
        %v1044 = vmul.f32 %v1008, %v1039
        %v1045 = vmul.f32 %v1009, %v1039
        %v1046 = vmul.f32 %v1010, %v1039
        %v1047 = vmul.f32 %v1011, %v1039
        %v1048 = vmul.f32 %v1012, %v1039
        %v1049 = vmul.f32 %v1013, %v1039
        %v1050 = vmul.f32 %v1014, %v1039
        %v1051 = vmul.f32 %v1015, %v1039
        %v1052 = vmul.f32 %v1016, %v1039
        %v1053 = vmul.f32 %v1017, %v1039
        %v1054 = vmul.f32 %v1018, %v1039
        %v1055 = vmul.f32 %v1019, %v1039
        %v1056 = vmul.f32 %v1020, %v1039
        %v1057 = vmul.f32 %v1021, %v1039
        %v1058 = vmul.f32 %v1022, %v1039
        %v1059 = vmul.f32 %v1023, %v1039
        %v1060 = vmul.f32 %v1024, %v1039
        %v1061 = vmul.f32 %v1025, %v1039
        %v1062 = vmul.f32 %v1026, %v1039
        %v1063 = vmul.f32 %v1027, %v1039
        %v1064 = vmul.f32 %v1028, %v1039
        %v1065 = vmul.f32 %v1029, %v1039
        %v1066 = vmul.f32 %v1030, %v1039
        %v1067 = vmul.f32 %v1031, %v1039
        %v1068 = vmul.f32 %v1032, %v1039
        %v1069 = vmul.f32 %v1033, %v1039
        %v1070 = vmul.f32 %v1034, %v1039
        %v1071 = vmul.f32 %v1035, %v1039
        %v1072 = vadd.f32 %v972, %v1040
        %v1073 = vadd.f32 %v973, %v1041
        %v1074 = vadd.f32 %v974, %v1042
        %v1075 = vadd.f32 %v975, %v1043
        %v1076 = vadd.f32 %v976, %v1044
        %v1077 = vadd.f32 %v977, %v1045
        %v1078 = vadd.f32 %v978, %v1046
        %v1079 = vadd.f32 %v979, %v1047
        %v1080 = vadd.f32 %v980, %v1048
        %v1081 = vadd.f32 %v981, %v1049
        %v1082 = vadd.f32 %v982, %v1050
        %v1083 = vadd.f32 %v983, %v1051
        %v1084 = vadd.f32 %v984, %v1052
        %v1085 = vadd.f32 %v985, %v1053
        %v1086 = vadd.f32 %v986, %v1054
        %v1087 = vadd.f32 %v987, %v1055
        %v1088 = vadd.f32 %v988, %v1056
        %v1089 = vadd.f32 %v989, %v1057
        %v1090 = vadd.f32 %v990, %v1058
        %v1091 = vadd.f32 %v991, %v1059
        %v1092 = vadd.f32 %v992, %v1060
        %v1093 = vadd.f32 %v993, %v1061
        %v1094 = vadd.f32 %v994, %v1062
        %v1095 = vadd.f32 %v995, %v1063
        %v1096 = vadd.f32 %v996, %v1064
        %v1097 = vadd.f32 %v997, %v1065
        %v1098 = vadd.f32 %v998, %v1066
        %v1099 = vadd.f32 %v999, %v1067
        %v1100 = vadd.f32 %v1000, %v1068
        %v1101 = vadd.f32 %v1001, %v1069
        %v1102 = vadd.f32 %v1002, %v1070
        %v1103 = vadd.f32 %v1003, %v1071
        %v1104 = vld [vmem:[%s532 + $0x2] sm:$0xff]
        %v1105 = vld [vmem:[%s532 + $0xa] sm:$0xff]
        %v1106 = vld [vmem:[%s532 + $0x1a] sm:$0xff]
        %v1107 = vld [vmem:[%s532 + $0x22] sm:$0xff]
        %v1108 = vld [vmem:[%s532 + $0x32] sm:$0xff]
        %v1109 = vld [vmem:[%s532 + $0x3a] sm:$0xff]
        %v1110 = vld [vmem:[%s532 + $0x4a] sm:$0xff]
        %v1111 = vld [vmem:[%s532 + $0x52] sm:$0xff]
        %v1112 = vld [vmem:[%s532 + $0x62] sm:$0xff]
        %v1113 = vld [vmem:[%s532 + $0x6a] sm:$0xff]
        %v1114 = vld [vmem:[%s532 + $0x7a] sm:$0xff]
        %v1115 = vld [vmem:[%s532 + $0x82] sm:$0xff]
        %v1116 = vld [vmem:[%s532 + $0x92] sm:$0xff]
        %v1117 = vld [vmem:[%s532 + $0x9a] sm:$0xff]
        %v1118 = vld [vmem:[%s532 + $0xaa] sm:$0xff]
        %v1119 = vld [vmem:[%s532 + $0xb2] sm:$0xff]
        %v1120 = vld [vmem:[%s532 + $0xc2] sm:$0xff]
        %v1121 = vld [vmem:[%s532 + $0xca] sm:$0xff]
        %v1122 = vld [vmem:[%s532 + $0xda] sm:$0xff]
        %v1123 = vld [vmem:[%s532 + $0xe2] sm:$0xff]
        %v1124 = vld [vmem:[%s532 + $0xf2] sm:$0xff]
        %v1125 = vld [vmem:[%s532 + $0xfa] sm:$0xff]
        %v1126 = vld [vmem:[%s532 + $0x10a] sm:$0xff]
        %v1127 = vld [vmem:[%s532 + $0x112] sm:$0xff]
        %v1128 = vld [vmem:[%s532 + $0x122] sm:$0xff]
        %v1129 = vld [vmem:[%s532 + $0x12a] sm:$0xff]
        %v1130 = vld [vmem:[%s532 + $0x13a] sm:$0xff]
        %v1131 = vld [vmem:[%s532 + $0x142] sm:$0xff]
        %v1132 = vld [vmem:[%s532 + $0x152] sm:$0xff]
        %v1133 = vld [vmem:[%s532 + $0x15a] sm:$0xff]
        %v1134 = vld [vmem:[%s532 + $0x16a] sm:$0xff]
        %v1135 = vld [vmem:[%s532 + $0x172] sm:$0xff]
        %v1136 = vlaneseq
        %v1137 = vshrl.u32 %v1136, 7
        %v1138 = vsub.s32 2, %v1137
        %v1139 = vrot.slane %v595, %v1138
        %v1140 = vmul.f32 %v1104, %v1139
        %v1141 = vmul.f32 %v1105, %v1139
        %v1142 = vmul.f32 %v1106, %v1139
        %v1143 = vmul.f32 %v1107, %v1139
        %v1144 = vmul.f32 %v1108, %v1139
        %v1145 = vmul.f32 %v1109, %v1139
        %v1146 = vmul.f32 %v1110, %v1139
        %v1147 = vmul.f32 %v1111, %v1139
        %v1148 = vmul.f32 %v1112, %v1139
        %v1149 = vmul.f32 %v1113, %v1139
        %v1150 = vmul.f32 %v1114, %v1139
        %v1151 = vmul.f32 %v1115, %v1139
        %v1152 = vmul.f32 %v1116, %v1139
        %v1153 = vmul.f32 %v1117, %v1139
        %v1154 = vmul.f32 %v1118, %v1139
        %v1155 = vmul.f32 %v1119, %v1139
        %v1156 = vmul.f32 %v1120, %v1139
        %v1157 = vmul.f32 %v1121, %v1139
        %v1158 = vmul.f32 %v1122, %v1139
        %v1159 = vmul.f32 %v1123, %v1139
        %v1160 = vmul.f32 %v1124, %v1139
        %v1161 = vmul.f32 %v1125, %v1139
        %v1162 = vmul.f32 %v1126, %v1139
        %v1163 = vmul.f32 %v1127, %v1139
        %v1164 = vmul.f32 %v1128, %v1139
        %v1165 = vmul.f32 %v1129, %v1139
        %v1166 = vmul.f32 %v1130, %v1139
        %v1167 = vmul.f32 %v1131, %v1139
        %v1168 = vmul.f32 %v1132, %v1139
        %v1169 = vmul.f32 %v1133, %v1139
        %v1170 = vmul.f32 %v1134, %v1139
        %v1171 = vmul.f32 %v1135, %v1139
        %v1172 = vadd.f32 %v1072, %v1140
        %v1173 = vadd.f32 %v1073, %v1141
        %v1174 = vadd.f32 %v1074, %v1142
        %v1175 = vadd.f32 %v1075, %v1143
        %v1176 = vadd.f32 %v1076, %v1144
        %v1177 = vadd.f32 %v1077, %v1145
        %v1178 = vadd.f32 %v1078, %v1146
        %v1179 = vadd.f32 %v1079, %v1147
        %v1180 = vadd.f32 %v1080, %v1148
        %v1181 = vadd.f32 %v1081, %v1149
        %v1182 = vadd.f32 %v1082, %v1150
        %v1183 = vadd.f32 %v1083, %v1151
        %v1184 = vadd.f32 %v1084, %v1152
        %v1185 = vadd.f32 %v1085, %v1153
        %v1186 = vadd.f32 %v1086, %v1154
        %v1187 = vadd.f32 %v1087, %v1155
        %v1188 = vadd.f32 %v1088, %v1156
        %v1189 = vadd.f32 %v1089, %v1157
        %v1190 = vadd.f32 %v1090, %v1158
        %v1191 = vadd.f32 %v1091, %v1159
        %v1192 = vadd.f32 %v1092, %v1160
        %v1193 = vadd.f32 %v1093, %v1161
        %v1194 = vadd.f32 %v1094, %v1162
        %v1195 = vadd.f32 %v1095, %v1163
        %v1196 = vadd.f32 %v1096, %v1164
        %v1197 = vadd.f32 %v1097, %v1165
        %v1198 = vadd.f32 %v1098, %v1166
        %v1199 = vadd.f32 %v1099, %v1167
        %v1200 = vadd.f32 %v1100, %v1168
        %v1201 = vadd.f32 %v1101, %v1169
        %v1202 = vadd.f32 %v1102, %v1170
        %v1203 = vadd.f32 %v1103, %v1171
        %s1204 = scalar_lea.vmem [#allocation2], 48
        %v1205 = vld [vmem:[%s1204] sm:$0xff]
        %v1206 = vld [vmem:[%s1204 + $0x8] sm:$0xff]
        %v1207 = vld [vmem:[%s1204 + $0x18] sm:$0xff]
        %v1208 = vld [vmem:[%s1204 + $0x20] sm:$0xff]
        %v1209 = vld [vmem:[%s1204 + $0x30] sm:$0xff]
        %v1210 = vld [vmem:[%s1204 + $0x38] sm:$0xff]
        %v1211 = vld [vmem:[%s1204 + $0x48] sm:$0xff]
        %v1212 = vld [vmem:[%s1204 + $0x50] sm:$0xff]
        %v1213 = vld [vmem:[%s1204 + $0x60] sm:$0xff]
        %v1214 = vld [vmem:[%s1204 + $0x68] sm:$0xff]
        %v1215 = vld [vmem:[%s1204 + $0x78] sm:$0xff]
        %v1216 = vld [vmem:[%s1204 + $0x80] sm:$0xff]
        %v1217 = vld [vmem:[%s1204 + $0x90] sm:$0xff]
        %v1218 = vld [vmem:[%s1204 + $0x98] sm:$0xff]
        %v1219 = vld [vmem:[%s1204 + $0xa8] sm:$0xff]
        %v1220 = vld [vmem:[%s1204 + $0xb0] sm:$0xff]
        %v1221 = vld [vmem:[%s1204 + $0xc0] sm:$0xff]
        %v1222 = vld [vmem:[%s1204 + $0xc8] sm:$0xff]
        %v1223 = vld [vmem:[%s1204 + $0xd8] sm:$0xff]
        %v1224 = vld [vmem:[%s1204 + $0xe0] sm:$0xff]
        %v1225 = vld [vmem:[%s1204 + $0xf0] sm:$0xff]
        %v1226 = vld [vmem:[%s1204 + $0xf8] sm:$0xff]
        %v1227 = vld [vmem:[%s1204 + $0x108] sm:$0xff]
        %v1228 = vld [vmem:[%s1204 + $0x110] sm:$0xff]
        %v1229 = vld [vmem:[%s1204 + $0x120] sm:$0xff]
        %v1230 = vld [vmem:[%s1204 + $0x128] sm:$0xff]
        %v1231 = vld [vmem:[%s1204 + $0x138] sm:$0xff]
        %v1232 = vld [vmem:[%s1204 + $0x140] sm:$0xff]
        %v1233 = vld [vmem:[%s1204 + $0x150] sm:$0xff]
        %v1234 = vld [vmem:[%s1204 + $0x158] sm:$0xff]
        %v1235 = vld [vmem:[%s1204 + $0x168] sm:$0xff]
        %v1236 = vld [vmem:[%s1204 + $0x170] sm:$0xff]
        %v1237 = vlaneseq
        %v1238 = vshrl.u32 %v1237, 7
        %v1239 = vsub.s32 0, %v1238
        %v1240 = vrot.slane %v596, %v1239
        %v1241 = vmul.f32 %v1205, %v1240
        %v1242 = vmul.f32 %v1206, %v1240
        %v1243 = vmul.f32 %v1207, %v1240
        %v1244 = vmul.f32 %v1208, %v1240
        %v1245 = vmul.f32 %v1209, %v1240
        %v1246 = vmul.f32 %v1210, %v1240
        %v1247 = vmul.f32 %v1211, %v1240
        %v1248 = vmul.f32 %v1212, %v1240
        %v1249 = vmul.f32 %v1213, %v1240
        %v1250 = vmul.f32 %v1214, %v1240
        %v1251 = vmul.f32 %v1215, %v1240
        %v1252 = vmul.f32 %v1216, %v1240
        %v1253 = vmul.f32 %v1217, %v1240
        %v1254 = vmul.f32 %v1218, %v1240
        %v1255 = vmul.f32 %v1219, %v1240
        %v1256 = vmul.f32 %v1220, %v1240
        %v1257 = vmul.f32 %v1221, %v1240
        %v1258 = vmul.f32 %v1222, %v1240
        %v1259 = vmul.f32 %v1223, %v1240
        %v1260 = vmul.f32 %v1224, %v1240
        %v1261 = vmul.f32 %v1225, %v1240
        %v1262 = vmul.f32 %v1226, %v1240
        %v1263 = vmul.f32 %v1227, %v1240
        %v1264 = vmul.f32 %v1228, %v1240
        %v1265 = vmul.f32 %v1229, %v1240
        %v1266 = vmul.f32 %v1230, %v1240
        %v1267 = vmul.f32 %v1231, %v1240
        %v1268 = vmul.f32 %v1232, %v1240
        %v1269 = vmul.f32 %v1233, %v1240
        %v1270 = vmul.f32 %v1234, %v1240
        %v1271 = vmul.f32 %v1235, %v1240
        %v1272 = vmul.f32 %v1236, %v1240
        %v1273 = vadd.f32 %v1172, %v1241
        %v1274 = vadd.f32 %v1173, %v1242
        %v1275 = vadd.f32 %v1174, %v1243
        %v1276 = vadd.f32 %v1175, %v1244
        %v1277 = vadd.f32 %v1176, %v1245
        %v1278 = vadd.f32 %v1177, %v1246
        %v1279 = vadd.f32 %v1178, %v1247
        %v1280 = vadd.f32 %v1179, %v1248
        %v1281 = vadd.f32 %v1180, %v1249
        %v1282 = vadd.f32 %v1181, %v1250
        %v1283 = vadd.f32 %v1182, %v1251
        %v1284 = vadd.f32 %v1183, %v1252
        %v1285 = vadd.f32 %v1184, %v1253
        %v1286 = vadd.f32 %v1185, %v1254
        %v1287 = vadd.f32 %v1186, %v1255
        %v1288 = vadd.f32 %v1187, %v1256
        %v1289 = vadd.f32 %v1188, %v1257
        %v1290 = vadd.f32 %v1189, %v1258
        %v1291 = vadd.f32 %v1190, %v1259
        %v1292 = vadd.f32 %v1191, %v1260
        %v1293 = vadd.f32 %v1192, %v1261
        %v1294 = vadd.f32 %v1193, %v1262
        %v1295 = vadd.f32 %v1194, %v1263
        %v1296 = vadd.f32 %v1195, %v1264
        %v1297 = vadd.f32 %v1196, %v1265
        %v1298 = vadd.f32 %v1197, %v1266
        %v1299 = vadd.f32 %v1198, %v1267
        %v1300 = vadd.f32 %v1199, %v1268
        %v1301 = vadd.f32 %v1200, %v1269
        %v1302 = vadd.f32 %v1201, %v1270
        %v1303 = vadd.f32 %v1202, %v1271
        %v1304 = vadd.f32 %v1203, %v1272
        %v1305 = vld [vmem:[%s1204 + $0x1] sm:$0xff]
        %v1306 = vld [vmem:[%s1204 + $0x9] sm:$0xff]
        %v1307 = vld [vmem:[%s1204 + $0x19] sm:$0xff]
        %v1308 = vld [vmem:[%s1204 + $0x21] sm:$0xff]
        %v1309 = vld [vmem:[%s1204 + $0x31] sm:$0xff]
        %v1310 = vld [vmem:[%s1204 + $0x39] sm:$0xff]
        %v1311 = vld [vmem:[%s1204 + $0x49] sm:$0xff]
        %v1312 = vld [vmem:[%s1204 + $0x51] sm:$0xff]
        %v1313 = vld [vmem:[%s1204 + $0x61] sm:$0xff]
        %v1314 = vld [vmem:[%s1204 + $0x69] sm:$0xff]
        %v1315 = vld [vmem:[%s1204 + $0x79] sm:$0xff]
        %v1316 = vld [vmem:[%s1204 + $0x81] sm:$0xff]
        %v1317 = vld [vmem:[%s1204 + $0x91] sm:$0xff]
        %v1318 = vld [vmem:[%s1204 + $0x99] sm:$0xff]
        %v1319 = vld [vmem:[%s1204 + $0xa9] sm:$0xff]
        %v1320 = vld [vmem:[%s1204 + $0xb1] sm:$0xff]
        %v1321 = vld [vmem:[%s1204 + $0xc1] sm:$0xff]
        %v1322 = vld [vmem:[%s1204 + $0xc9] sm:$0xff]
        %v1323 = vld [vmem:[%s1204 + $0xd9] sm:$0xff]
        %v1324 = vld [vmem:[%s1204 + $0xe1] sm:$0xff]
        %v1325 = vld [vmem:[%s1204 + $0xf1] sm:$0xff]
        %v1326 = vld [vmem:[%s1204 + $0xf9] sm:$0xff]
        %v1327 = vld [vmem:[%s1204 + $0x109] sm:$0xff]
        %v1328 = vld [vmem:[%s1204 + $0x111] sm:$0xff]
        %v1329 = vld [vmem:[%s1204 + $0x121] sm:$0xff]
        %v1330 = vld [vmem:[%s1204 + $0x129] sm:$0xff]
        %v1331 = vld [vmem:[%s1204 + $0x139] sm:$0xff]
        %v1332 = vld [vmem:[%s1204 + $0x141] sm:$0xff]
        %v1333 = vld [vmem:[%s1204 + $0x151] sm:$0xff]
        %v1334 = vld [vmem:[%s1204 + $0x159] sm:$0xff]
        %v1335 = vld [vmem:[%s1204 + $0x169] sm:$0xff]
        %v1336 = vld [vmem:[%s1204 + $0x171] sm:$0xff]
        %v1337 = vlaneseq
        %v1338 = vshrl.u32 %v1337, 7
        %v1339 = vsub.s32 1, %v1338
        %v1340 = vrot.slane %v596, %v1339
        %v1341 = vmul.f32 %v1305, %v1340
        %v1342 = vmul.f32 %v1306, %v1340
        %v1343 = vmul.f32 %v1307, %v1340
        %v1344 = vmul.f32 %v1308, %v1340
        %v1345 = vmul.f32 %v1309, %v1340
        %v1346 = vmul.f32 %v1310, %v1340
        %v1347 = vmul.f32 %v1311, %v1340
        %v1348 = vmul.f32 %v1312, %v1340
        %v1349 = vmul.f32 %v1313, %v1340
        %v1350 = vmul.f32 %v1314, %v1340
        %v1351 = vmul.f32 %v1315, %v1340
        %v1352 = vmul.f32 %v1316, %v1340
        %v1353 = vmul.f32 %v1317, %v1340
        %v1354 = vmul.f32 %v1318, %v1340
        %v1355 = vmul.f32 %v1319, %v1340
        %v1356 = vmul.f32 %v1320, %v1340
        %v1357 = vmul.f32 %v1321, %v1340
        %v1358 = vmul.f32 %v1322, %v1340
        %v1359 = vmul.f32 %v1323, %v1340
        %v1360 = vmul.f32 %v1324, %v1340
        %v1361 = vmul.f32 %v1325, %v1340
        %v1362 = vmul.f32 %v1326, %v1340
        %v1363 = vmul.f32 %v1327, %v1340
        %v1364 = vmul.f32 %v1328, %v1340
        %v1365 = vmul.f32 %v1329, %v1340
        %v1366 = vmul.f32 %v1330, %v1340
        %v1367 = vmul.f32 %v1331, %v1340
        %v1368 = vmul.f32 %v1332, %v1340
        %v1369 = vmul.f32 %v1333, %v1340
        %v1370 = vmul.f32 %v1334, %v1340
        %v1371 = vmul.f32 %v1335, %v1340
        %v1372 = vmul.f32 %v1336, %v1340
        %v1373 = vadd.f32 %v1273, %v1341
        %v1374 = vadd.f32 %v1274, %v1342
        %v1375 = vadd.f32 %v1275, %v1343
        %v1376 = vadd.f32 %v1276, %v1344
        %v1377 = vadd.f32 %v1277, %v1345
        %v1378 = vadd.f32 %v1278, %v1346
        %v1379 = vadd.f32 %v1279, %v1347
        %v1380 = vadd.f32 %v1280, %v1348
        %v1381 = vadd.f32 %v1281, %v1349
        %v1382 = vadd.f32 %v1282, %v1350
        %v1383 = vadd.f32 %v1283, %v1351
        %v1384 = vadd.f32 %v1284, %v1352
        %v1385 = vadd.f32 %v1285, %v1353
        %v1386 = vadd.f32 %v1286, %v1354
        %v1387 = vadd.f32 %v1287, %v1355
        %v1388 = vadd.f32 %v1288, %v1356
        %v1389 = vadd.f32 %v1289, %v1357
        %v1390 = vadd.f32 %v1290, %v1358
        %v1391 = vadd.f32 %v1291, %v1359
        %v1392 = vadd.f32 %v1292, %v1360
        %v1393 = vadd.f32 %v1293, %v1361
        %v1394 = vadd.f32 %v1294, %v1362
        %v1395 = vadd.f32 %v1295, %v1363
        %v1396 = vadd.f32 %v1296, %v1364
        %v1397 = vadd.f32 %v1297, %v1365
        %v1398 = vadd.f32 %v1298, %v1366
        %v1399 = vadd.f32 %v1299, %v1367
        %v1400 = vadd.f32 %v1300, %v1368
        %v1401 = vadd.f32 %v1301, %v1369
        %v1402 = vadd.f32 %v1302, %v1370
        %v1403 = vadd.f32 %v1303, %v1371
        %v1404 = vadd.f32 %v1304, %v1372
        %v1405 = vld [vmem:[%s1204 + $0x2] sm:$0xff]
        %v1406 = vld [vmem:[%s1204 + $0xa] sm:$0xff]
        %v1407 = vld [vmem:[%s1204 + $0x1a] sm:$0xff]
        %v1408 = vld [vmem:[%s1204 + $0x22] sm:$0xff]
        %v1409 = vld [vmem:[%s1204 + $0x32] sm:$0xff]
        %v1410 = vld [vmem:[%s1204 + $0x3a] sm:$0xff]
        %v1411 = vld [vmem:[%s1204 + $0x4a] sm:$0xff]
        %v1412 = vld [vmem:[%s1204 + $0x52] sm:$0xff]
        %v1413 = vld [vmem:[%s1204 + $0x62] sm:$0xff]
        %v1414 = vld [vmem:[%s1204 + $0x6a] sm:$0xff]
        %v1415 = vld [vmem:[%s1204 + $0x7a] sm:$0xff]
        %v1416 = vld [vmem:[%s1204 + $0x82] sm:$0xff]
        %v1417 = vld [vmem:[%s1204 + $0x92] sm:$0xff]
        %v1418 = vld [vmem:[%s1204 + $0x9a] sm:$0xff]
        %v1419 = vld [vmem:[%s1204 + $0xaa] sm:$0xff]
        %v1420 = vld [vmem:[%s1204 + $0xb2] sm:$0xff]
        %v1421 = vld [vmem:[%s1204 + $0xc2] sm:$0xff]
        %v1422 = vld [vmem:[%s1204 + $0xca] sm:$0xff]
        %v1423 = vld [vmem:[%s1204 + $0xda] sm:$0xff]
        %v1424 = vld [vmem:[%s1204 + $0xe2] sm:$0xff]
        %v1425 = vld [vmem:[%s1204 + $0xf2] sm:$0xff]
        %v1426 = vld [vmem:[%s1204 + $0xfa] sm:$0xff]
        %v1427 = vld [vmem:[%s1204 + $0x10a] sm:$0xff]
        %v1428 = vld [vmem:[%s1204 + $0x112] sm:$0xff]
        %v1429 = vld [vmem:[%s1204 + $0x122] sm:$0xff]
        %v1430 = vld [vmem:[%s1204 + $0x12a] sm:$0xff]
        %v1431 = vld [vmem:[%s1204 + $0x13a] sm:$0xff]
        %v1432 = vld [vmem:[%s1204 + $0x142] sm:$0xff]
        %v1433 = vld [vmem:[%s1204 + $0x152] sm:$0xff]
        %v1434 = vld [vmem:[%s1204 + $0x15a] sm:$0xff]
        %v1435 = vld [vmem:[%s1204 + $0x16a] sm:$0xff]
        %v1436 = vld [vmem:[%s1204 + $0x172] sm:$0xff]
        %v1437 = vlaneseq
        %v1438 = vshrl.u32 %v1437, 7
        %v1439 = vsub.s32 2, %v1438
        %v1440 = vrot.slane %v596, %v1439
        %v1441 = vmul.f32 %v1405, %v1440
        %v1442 = vmul.f32 %v1406, %v1440
        %v1443 = vmul.f32 %v1407, %v1440
        %v1444 = vmul.f32 %v1408, %v1440
        %v1445 = vmul.f32 %v1409, %v1440
        %v1446 = vmul.f32 %v1410, %v1440
        %v1447 = vmul.f32 %v1411, %v1440
        %v1448 = vmul.f32 %v1412, %v1440
        %v1449 = vmul.f32 %v1413, %v1440
        %v1450 = vmul.f32 %v1414, %v1440
        %v1451 = vmul.f32 %v1415, %v1440
        %v1452 = vmul.f32 %v1416, %v1440
        %v1453 = vmul.f32 %v1417, %v1440
        %v1454 = vmul.f32 %v1418, %v1440
        %v1455 = vmul.f32 %v1419, %v1440
        %v1456 = vmul.f32 %v1420, %v1440
        %v1457 = vmul.f32 %v1421, %v1440
        %v1458 = vmul.f32 %v1422, %v1440
        %v1459 = vmul.f32 %v1423, %v1440
        %v1460 = vmul.f32 %v1424, %v1440
        %v1461 = vmul.f32 %v1425, %v1440
        %v1462 = vmul.f32 %v1426, %v1440
        %v1463 = vmul.f32 %v1427, %v1440
        %v1464 = vmul.f32 %v1428, %v1440
        %v1465 = vmul.f32 %v1429, %v1440
        %v1466 = vmul.f32 %v1430, %v1440
        %v1467 = vmul.f32 %v1431, %v1440
        %v1468 = vmul.f32 %v1432, %v1440
        %v1469 = vmul.f32 %v1433, %v1440
        %v1470 = vmul.f32 %v1434, %v1440
        %v1471 = vmul.f32 %v1435, %v1440
        %v1472 = vmul.f32 %v1436, %v1440
        %v1473 = vadd.f32 %v1373, %v1441
        %v1474 = vadd.f32 %v1374, %v1442
        %v1475 = vadd.f32 %v1375, %v1443
        %v1476 = vadd.f32 %v1376, %v1444
        %v1477 = vadd.f32 %v1377, %v1445
        %v1478 = vadd.f32 %v1378, %v1446
        %v1479 = vadd.f32 %v1379, %v1447
        %v1480 = vadd.f32 %v1380, %v1448
        %v1481 = vadd.f32 %v1381, %v1449
        %v1482 = vadd.f32 %v1382, %v1450
        %v1483 = vadd.f32 %v1383, %v1451
        %v1484 = vadd.f32 %v1384, %v1452
        %v1485 = vadd.f32 %v1385, %v1453
        %v1486 = vadd.f32 %v1386, %v1454
        %v1487 = vadd.f32 %v1387, %v1455
        %v1488 = vadd.f32 %v1388, %v1456
        %v1489 = vadd.f32 %v1389, %v1457
        %v1490 = vadd.f32 %v1390, %v1458
        %v1491 = vadd.f32 %v1391, %v1459
        %v1492 = vadd.f32 %v1392, %v1460
        %v1493 = vadd.f32 %v1393, %v1461
        %v1494 = vadd.f32 %v1394, %v1462
        %v1495 = vadd.f32 %v1395, %v1463
        %v1496 = vadd.f32 %v1396, %v1464
        %v1497 = vadd.f32 %v1397, %v1465
        %v1498 = vadd.f32 %v1398, %v1466
        %v1499 = vadd.f32 %v1399, %v1467
        %v1500 = vadd.f32 %v1400, %v1468
        %v1501 = vadd.f32 %v1401, %v1469
        %v1502 = vadd.f32 %v1402, %v1470
        %v1503 = vadd.f32 %v1403, %v1471
        %v1504 = vadd.f32 %v1404, %v1472
        %v1505 = vadd.f32 %v1473, 3.0
        %v1506 = vadd.f32 %v1474, 3.0
        %v1507 = vadd.f32 %v1475, 3.0
        %v1508 = vadd.f32 %v1476, 3.0
        %v1509 = vadd.f32 %v1477, 3.0
        %v1510 = vadd.f32 %v1478, 3.0
        %v1511 = vadd.f32 %v1479, 3.0
        %v1512 = vadd.f32 %v1480, 3.0
        %v1513 = vadd.f32 %v1481, 3.0
        %v1514 = vadd.f32 %v1482, 3.0
        %v1515 = vadd.f32 %v1483, 3.0
        %v1516 = vadd.f32 %v1484, 3.0
        %v1517 = vadd.f32 %v1485, 3.0
        %v1518 = vadd.f32 %v1486, 3.0
        %v1519 = vadd.f32 %v1487, 3.0
        %v1520 = vadd.f32 %v1488, 3.0
        %v1521 = vadd.f32 %v1489, 3.0
        %v1522 = vadd.f32 %v1490, 3.0
        %v1523 = vadd.f32 %v1491, 3.0
        %v1524 = vadd.f32 %v1492, 3.0
        %v1525 = vadd.f32 %v1493, 3.0
        %v1526 = vadd.f32 %v1494, 3.0
        %v1527 = vadd.f32 %v1495, 3.0
        %v1528 = vadd.f32 %v1496, 3.0
        %v1529 = vadd.f32 %v1497, 3.0
        %v1530 = vadd.f32 %v1498, 3.0
        %v1531 = vadd.f32 %v1499, 3.0
        %v1532 = vadd.f32 %v1500, 3.0
        %v1533 = vadd.f32 %v1501, 3.0
        %v1534 = vadd.f32 %v1502, 3.0
        %v1535 = vadd.f32 %v1503, 3.0
        %v1536 = vadd.f32 %v1504, 3.0
        %v1537 = vmax.f32 %v1505, 0.0
        %v1538 = vmax.f32 %v1506, 0.0
        %v1539 = vmax.f32 %v1507, 0.0
        %v1540 = vmax.f32 %v1508, 0.0
        %v1541 = vmax.f32 %v1509, 0.0
        %v1542 = vmax.f32 %v1510, 0.0
        %v1543 = vmax.f32 %v1511, 0.0
        %v1544 = vmax.f32 %v1512, 0.0
        %v1545 = vmax.f32 %v1513, 0.0
        %v1546 = vmax.f32 %v1514, 0.0
        %v1547 = vmax.f32 %v1515, 0.0
        %v1548 = vmax.f32 %v1516, 0.0
        %v1549 = vmax.f32 %v1517, 0.0
        %v1550 = vmax.f32 %v1518, 0.0
        %v1551 = vmax.f32 %v1519, 0.0
        %v1552 = vmax.f32 %v1520, 0.0
        %v1553 = vmax.f32 %v1521, 0.0
        %v1554 = vmax.f32 %v1522, 0.0
        %v1555 = vmax.f32 %v1523, 0.0
        %v1556 = vmax.f32 %v1524, 0.0
        %v1557 = vmax.f32 %v1525, 0.0
        %v1558 = vmax.f32 %v1526, 0.0
        %v1559 = vmax.f32 %v1527, 0.0
        %v1560 = vmax.f32 %v1528, 0.0
        %v1561 = vmax.f32 %v1529, 0.0
        %v1562 = vmax.f32 %v1530, 0.0
        %v1563 = vmax.f32 %v1531, 0.0
        %v1564 = vmax.f32 %v1532, 0.0
        %v1565 = vmax.f32 %v1533, 0.0
        %v1566 = vmax.f32 %v1534, 0.0
        %v1567 = vmax.f32 %v1535, 0.0
        %v1568 = vmax.f32 %v1536, 0.0
        %v1569 = vmin.f32 %v1537, 6.0
        %v1570 = vmin.f32 %v1538, 6.0
        %v1571 = vmin.f32 %v1539, 6.0
        %v1572 = vmin.f32 %v1540, 6.0
        %v1573 = vmin.f32 %v1541, 6.0
        %v1574 = vmin.f32 %v1542, 6.0
        %v1575 = vmin.f32 %v1543, 6.0
        %v1576 = vmin.f32 %v1544, 6.0
        %v1577 = vmin.f32 %v1545, 6.0
        %v1578 = vmin.f32 %v1546, 6.0
        %v1579 = vmin.f32 %v1547, 6.0
        %v1580 = vmin.f32 %v1548, 6.0
        %v1581 = vmin.f32 %v1549, 6.0
        %v1582 = vmin.f32 %v1550, 6.0
        %v1583 = vmin.f32 %v1551, 6.0
        %v1584 = vmin.f32 %v1552, 6.0
        %v1585 = vmin.f32 %v1553, 6.0
        %v1586 = vmin.f32 %v1554, 6.0
        %v1587 = vmin.f32 %v1555, 6.0
        %v1588 = vmin.f32 %v1556, 6.0
        %v1589 = vmin.f32 %v1557, 6.0
        %v1590 = vmin.f32 %v1558, 6.0
        %v1591 = vmin.f32 %v1559, 6.0
        %v1592 = vmin.f32 %v1560, 6.0
        %v1593 = vmin.f32 %v1561, 6.0
        %v1594 = vmin.f32 %v1562, 6.0
        %v1595 = vmin.f32 %v1563, 6.0
        %v1596 = vmin.f32 %v1564, 6.0
        %v1597 = vmin.f32 %v1565, 6.0
        %v1598 = vmin.f32 %v1566, 6.0
        %v1599 = vmin.f32 %v1567, 6.0
        %v1600 = vmin.f32 %v1568, 6.0
        %v1601 = vmul.f32 %v1473, %v1569
        %v1602 = vmul.f32 %v1474, %v1570
        %v1603 = vmul.f32 %v1475, %v1571
        %v1604 = vmul.f32 %v1476, %v1572
        %v1605 = vmul.f32 %v1477, %v1573
        %v1606 = vmul.f32 %v1478, %v1574
        %v1607 = vmul.f32 %v1479, %v1575
        %v1608 = vmul.f32 %v1480, %v1576
        %v1609 = vmul.f32 %v1481, %v1577
        %v1610 = vmul.f32 %v1482, %v1578
        %v1611 = vmul.f32 %v1483, %v1579
        %v1612 = vmul.f32 %v1484, %v1580
        %v1613 = vmul.f32 %v1485, %v1581
        %v1614 = vmul.f32 %v1486, %v1582
        %v1615 = vmul.f32 %v1487, %v1583
        %v1616 = vmul.f32 %v1488, %v1584
        %v1617 = vmul.f32 %v1489, %v1585
        %v1618 = vmul.f32 %v1490, %v1586
        %v1619 = vmul.f32 %v1491, %v1587
        %v1620 = vmul.f32 %v1492, %v1588
        %v1621 = vmul.f32 %v1493, %v1589
        %v1622 = vmul.f32 %v1494, %v1590
        %v1623 = vmul.f32 %v1495, %v1591
        %v1624 = vmul.f32 %v1496, %v1592
        %v1625 = vmul.f32 %v1497, %v1593
        %v1626 = vmul.f32 %v1498, %v1594
        %v1627 = vmul.f32 %v1499, %v1595
        %v1628 = vmul.f32 %v1500, %v1596
        %v1629 = vmul.f32 %v1501, %v1597
        %v1630 = vmul.f32 %v1502, %v1598
        %v1631 = vmul.f32 %v1503, %v1599
        %v1632 = vmul.f32 %v1504, %v1600
        %v1633 = vmul.f32 %v1601, 0.16666667
        %v1634 = vmul.f32 %v1602, 0.16666667
        %v1635 = vmul.f32 %v1603, 0.16666667
        %v1636 = vmul.f32 %v1604, 0.16666667
        %v1637 = vmul.f32 %v1605, 0.16666667
        %v1638 = vmul.f32 %v1606, 0.16666667
        %v1639 = vmul.f32 %v1607, 0.16666667
        %v1640 = vmul.f32 %v1608, 0.16666667
        %v1641 = vmul.f32 %v1609, 0.16666667
        %v1642 = vmul.f32 %v1610, 0.16666667
        %v1643 = vmul.f32 %v1611, 0.16666667
        %v1644 = vmul.f32 %v1612, 0.16666667
        %v1645 = vmul.f32 %v1613, 0.16666667
        %v1646 = vmul.f32 %v1614, 0.16666667
        %v1647 = vmul.f32 %v1615, 0.16666667
        %v1648 = vmul.f32 %v1616, 0.16666667
        %v1649 = vmul.f32 %v1617, 0.16666667
        %v1650 = vmul.f32 %v1618, 0.16666667
        %v1651 = vmul.f32 %v1619, 0.16666667
        %v1652 = vmul.f32 %v1620, 0.16666667
        %v1653 = vmul.f32 %v1621, 0.16666667
        %v1654 = vmul.f32 %v1622, 0.16666667
        %v1655 = vmul.f32 %v1623, 0.16666667
        %v1656 = vmul.f32 %v1624, 0.16666667
        %v1657 = vmul.f32 %v1625, 0.16666667
        %v1658 = vmul.f32 %v1626, 0.16666667
        %v1659 = vmul.f32 %v1627, 0.16666667
        %v1660 = vmul.f32 %v1628, 0.16666667
        %v1661 = vmul.f32 %v1629, 0.16666667
        %v1662 = vmul.f32 %v1630, 0.16666667
        %v1663 = vmul.f32 %v1631, 0.16666667
        %v1664 = vmul.f32 %v1632, 0.16666667
        %v1665 = vld [vmem:[#allocation11] sm:$0xff]
        %v1666 = vld [vmem:[#allocation11 + $0x8] sm:$0xff]
        %v1667 = vld [vmem:[#allocation11 + $0x10] sm:$0xff]
        %v1668 = vld [vmem:[#allocation11 + $0x18] sm:$0xff]
        %v1669 = vld [vmem:[#allocation11 + $0x20] sm:$0xff]
        %v1670 = vld [vmem:[#allocation11 + $0x28] sm:$0xff]
        %v1671 = vld [vmem:[#allocation11 + $0x30] sm:$0xff]
        %v1672 = vld [vmem:[#allocation11 + $0x38] sm:$0xff]
        %v1673 = vld [vmem:[#allocation11 + $0x40] sm:$0xff]
        %v1674 = vld [vmem:[#allocation11 + $0x48] sm:$0xff]
        %v1675 = vld [vmem:[#allocation11 + $0x50] sm:$0xff]
        %v1676 = vld [vmem:[#allocation11 + $0x58] sm:$0xff]
        %v1677 = vld [vmem:[#allocation11 + $0x60] sm:$0xff]
        %v1678 = vld [vmem:[#allocation11 + $0x68] sm:$0xff]
        %v1679 = vld [vmem:[#allocation11 + $0x70] sm:$0xff]
        %v1680 = vld [vmem:[#allocation11 + $0x78] sm:$0xff]
        %v1681 = vld [vmem:[%s6] sm:$0x1]
        %v1683 = vlaneseq
        %v1684 = vshrl.u32 %v1683, 7
        %v1685 = vsub.s32 0, %v1684
        %v1686 = vrot.slane %v1681, %v1685
        %1688 = vmatprep.subr.mxu0 0.0
        %1689 = vmatpush1.msra.mxu0 %v1665
        %1690 = vmatprep.subr.mxu0 0.0
        %1691 = vmatpush1.msra.mxu0 %v1666
        %1692 = vmatprep.subr.mxu0 0.0
        %1693 = vmatpush1.msra.mxu0 %v1667
        %1694 = vmatprep.subr.mxu0 0.0
        %1695 = vmatpush1.msra.mxu0 %v1668
        %1696 = vmatprep.subr.mxu0 0.0
        %1697 = vmatpush1.msra.mxu0 %v1669
        %1698 = vmatprep.subr.mxu0 0.0
        %1699 = vmatpush1.msra.mxu0 %v1670
        %1700 = vmatprep.subr.mxu0 0.0
        %1701 = vmatpush1.msra.mxu0 %v1671
        %1702 = vmatprep.subr.mxu0 0.0
        %1703 = vmatpush1.msra.mxu0 %v1672
        %1704 = vmatprep.subr.mxu0 0.0
        %1705 = vmatpush1.msra.mxu0 %v1673
        %1706 = vmatprep.subr.mxu0 0.0
        %1707 = vmatpush1.msra.mxu0 %v1674
        %1708 = vmatprep.subr.mxu0 0.0
        %1709 = vmatpush1.msra.mxu0 %v1675
        %1710 = vmatprep.subr.mxu0 0.0
        %1711 = vmatpush1.msra.mxu0 %v1676
        %1712 = vmatprep.subr.mxu0 0.0
        %1713 = vmatpush1.msra.mxu0 %v1677
        %1714 = vmatprep.subr.mxu0 0.0
        %1715 = vmatpush1.msra.mxu0 %v1678
        %1716 = vmatprep.subr.mxu0 0.0
        %1717 = vmatpush1.msra.mxu0 %v1679
        %1718 = vmatprep.subr.mxu0 0.0
        %1719 = vmatpush1.msra.mxu0 %v1680
        %1720 = vmatprep.subr.mxu0 0.0
        %1721 = vmatpush1.msra.mxu0 0.0
        %1722 = vmatprep.subr.mxu0 0.0
        %1723 = vmatpush1.msra.mxu0 0.0
        %1724 = vmatprep.subr.mxu0 0.0
        %1725 = vmatpush1.msra.mxu0 0.0
        %1726 = vmatprep.subr.mxu0 0.0
        %1727 = vmatpush1.msra.mxu0 0.0
        %1728 = vmatprep.subr.mxu0 0.0
        %1729 = vmatpush1.msra.mxu0 0.0
        %1730 = vmatprep.subr.mxu0 0.0
        %1731 = vmatpush1.msra.mxu0 0.0
        %1732 = vmatprep.subr.mxu0 0.0
        %1733 = vmatpush1.msra.mxu0 0.0
        %1734 = vmatprep.subr.mxu0 0.0
        %1735 = vmatpush1.msra.mxu0 0.0
        %1736 = vmatprep.subr.mxu0 0.0
        %1737 = vmatpush1.msra.mxu0 0.0
        %1738 = vmatprep.subr.mxu0 0.0
        %1739 = vmatpush1.msra.mxu0 0.0
        %1740 = vmatprep.subr.mxu0 0.0
        %1741 = vmatpush1.msra.mxu0 0.0
        %1742 = vmatprep.subr.mxu0 0.0
        %1743 = vmatpush1.msra.mxu0 0.0
        %1744 = vmatprep.subr.mxu0 0.0
        %1745 = vmatpush1.msra.mxu0 0.0
        %1746 = vmatprep.subr.mxu0 0.0
        %1747 = vmatpush1.msra.mxu0 0.0
        %1748 = vmatprep.subr.mxu0 0.0
        %1749 = vmatpush1.msra.mxu0 0.0
        %1750 = vmatprep.subr.mxu0 0.0
        %1751 = vmatpush1.msra.mxu0 0.0
        %1752 = vmatprep.mubr.f32.mxu0 0.0
        %1753 = vmatmul.mubr.f32.gmra.mrb[0].mxu0 %v1633
        %v1754 = vpop.f32.mrb[0].mxu0
        %v1755 = vadd.f32 %v1686, %v1754
        %v1756 = vpop.f32.mrb[0].mxu0
        %1757 = vmatprep.mubr.f32.mxu0 0.0
        %1758 = vmatmul.mubr.f32.gmra.mrb[0].mxu0 %v1634
        %v1759 = vpop.f32.mrb[0].mxu0
        %v1760 = vadd.f32 %v1686, %v1759
        %v1761 = vpop.f32.mrb[0].mxu0
        %1762 = vmatprep.mubr.f32.mxu0 0.0
        %1763 = vmatmul.mubr.f32.gmra.mrb[0].mxu0 %v1635
        %v1764 = vpop.f32.mrb[0].mxu0
        %v1765 = vadd.f32 %v1686, %v1764
        %v1766 = vpop.f32.mrb[0].mxu0
        %1767 = vmatprep.mubr.f32.mxu0 0.0
        %1768 = vmatmul.mubr.f32.gmra.mrb[0].mxu0 %v1636
        %v1769 = vpop.f32.mrb[0].mxu0
        %v1770 = vadd.f32 %v1686, %v1769
        %v1771 = vpop.f32.mrb[0].mxu0
        %1772 = vmatprep.mubr.f32.mxu0 0.0
        %1773 = vmatmul.mubr.f32.gmra.mrb[0].mxu0 %v1637
        %v1774 = vpop.f32.mrb[0].mxu0
        %v1775 = vadd.f32 %v1686, %v1774
        %v1776 = vpop.f32.mrb[0].mxu0
        %1777 = vmatprep.mubr.f32.mxu0 0.0
        %1778 = vmatmul.mubr.f32.gmra.mrb[0].mxu0 %v1638
        %v1779 = vpop.f32.mrb[0].mxu0
        %v1780 = vadd.f32 %v1686, %v1779
        %v1781 = vpop.f32.mrb[0].mxu0
        %1782 = vmatprep.mubr.f32.mxu0 0.0
        %1783 = vmatmul.mubr.f32.gmra.mrb[0].mxu0 %v1639
        %v1784 = vpop.f32.mrb[0].mxu0
        %v1785 = vadd.f32 %v1686, %v1784
        %v1786 = vpop.f32.mrb[0].mxu0
        %1787 = vmatprep.mubr.f32.mxu0 0.0
        %1788 = vmatmul.mubr.f32.gmra.mrb[0].mxu0 %v1640
        %v1789 = vpop.f32.mrb[0].mxu0
        %v1790 = vadd.f32 %v1686, %v1789
        %v1791 = vpop.f32.mrb[0].mxu0
        %1792 = vmatprep.mubr.f32.mxu0 0.0
        %1793 = vmatmul.mubr.f32.gmra.mrb[0].mxu0 %v1641
        %v1794 = vpop.f32.mrb[0].mxu0
        %v1795 = vadd.f32 %v1686, %v1794
        %v1796 = vpop.f32.mrb[0].mxu0
        %1797 = vmatprep.mubr.f32.mxu0 0.0
        %1798 = vmatmul.mubr.f32.gmra.mrb[0].mxu0 %v1642
        %v1799 = vpop.f32.mrb[0].mxu0
        %v1800 = vadd.f32 %v1686, %v1799
        %v1801 = vpop.f32.mrb[0].mxu0
        %1802 = vmatprep.mubr.f32.mxu0 0.0
        %1803 = vmatmul.mubr.f32.gmra.mrb[0].mxu0 %v1643
        %v1804 = vpop.f32.mrb[0].mxu0
        %v1805 = vadd.f32 %v1686, %v1804
        %v1806 = vpop.f32.mrb[0].mxu0
        %1807 = vmatprep.mubr.f32.mxu0 0.0
        %1808 = vmatmul.mubr.f32.gmra.mrb[0].mxu0 %v1644
        %v1809 = vpop.f32.mrb[0].mxu0
        %v1810 = vadd.f32 %v1686, %v1809
        %v1811 = vpop.f32.mrb[0].mxu0
        %1812 = vmatprep.mubr.f32.mxu0 0.0
        %1813 = vmatmul.mubr.f32.gmra.mrb[0].mxu0 %v1645
        %v1814 = vpop.f32.mrb[0].mxu0
        %v1815 = vadd.f32 %v1686, %v1814
        %v1816 = vpop.f32.mrb[0].mxu0
        %1817 = vmatprep.mubr.f32.mxu0 0.0
        %1818 = vmatmul.mubr.f32.gmra.mrb[0].mxu0 %v1646
        %v1819 = vpop.f32.mrb[0].mxu0
        %v1820 = vadd.f32 %v1686, %v1819
        %v1821 = vpop.f32.mrb[0].mxu0
        %1822 = vmatprep.mubr.f32.mxu0 0.0
        %1823 = vmatmul.mubr.f32.gmra.mrb[0].mxu0 %v1647
        %v1824 = vpop.f32.mrb[0].mxu0
        %v1825 = vadd.f32 %v1686, %v1824
        %v1826 = vpop.f32.mrb[0].mxu0
        %1827 = vmatprep.mubr.f32.mxu0 0.0
        %1828 = vmatmul.mubr.f32.gmra.mrb[0].mxu0 %v1648
        %v1829 = vpop.f32.mrb[0].mxu0
        %v1830 = vadd.f32 %v1686, %v1829
        %v1831 = vpop.f32.mrb[0].mxu0
        %1832 = vmatprep.mubr.f32.mxu0 0.0
        %1833 = vmatmul.mubr.f32.gmra.mrb[0].mxu0 %v1649
        %v1834 = vpop.f32.mrb[0].mxu0
        %v1835 = vadd.f32 %v1686, %v1834
        %v1836 = vpop.f32.mrb[0].mxu0
        %1837 = vmatprep.mubr.f32.mxu0 0.0
        %1838 = vmatmul.mubr.f32.gmra.mrb[0].mxu0 %v1650
        %v1839 = vpop.f32.mrb[0].mxu0
        %v1840 = vadd.f32 %v1686, %v1839
        %v1841 = vpop.f32.mrb[0].mxu0
        %1842 = vmatprep.mubr.f32.mxu0 0.0
        %1843 = vmatmul.mubr.f32.gmra.mrb[0].mxu0 %v1651
        %v1844 = vpop.f32.mrb[0].mxu0
        %v1845 = vadd.f32 %v1686, %v1844
        %v1846 = vpop.f32.mrb[0].mxu0
        %1847 = vmatprep.mubr.f32.mxu0 0.0
        %1848 = vmatmul.mubr.f32.gmra.mrb[0].mxu0 %v1652
        %v1849 = vpop.f32.mrb[0].mxu0
        %v1850 = vadd.f32 %v1686, %v1849
        %v1851 = vpop.f32.mrb[0].mxu0
        %1852 = vmatprep.mubr.f32.mxu0 0.0
        %1853 = vmatmul.mubr.f32.gmra.mrb[0].mxu0 %v1653
        %v1854 = vpop.f32.mrb[0].mxu0
        %v1855 = vadd.f32 %v1686, %v1854
        %v1856 = vpop.f32.mrb[0].mxu0
        %1857 = vmatprep.mubr.f32.mxu0 0.0
        %1858 = vmatmul.mubr.f32.gmra.mrb[0].mxu0 %v1654
        %v1859 = vpop.f32.mrb[0].mxu0
        %v1860 = vadd.f32 %v1686, %v1859
        %v1861 = vpop.f32.mrb[0].mxu0
        %1862 = vmatprep.mubr.f32.mxu0 0.0
        %1863 = vmatmul.mubr.f32.gmra.mrb[0].mxu0 %v1655
        %v1864 = vpop.f32.mrb[0].mxu0
        %v1865 = vadd.f32 %v1686, %v1864
        %v1866 = vpop.f32.mrb[0].mxu0
        %1867 = vmatprep.mubr.f32.mxu0 0.0
        %1868 = vmatmul.mubr.f32.gmra.mrb[0].mxu0 %v1656
        %v1869 = vpop.f32.mrb[0].mxu0
        %v1870 = vadd.f32 %v1686, %v1869
        %v1871 = vpop.f32.mrb[0].mxu0
        %1872 = vmatprep.mubr.f32.mxu0 0.0
        %1873 = vmatmul.mubr.f32.gmra.mrb[0].mxu0 %v1657
        %v1874 = vpop.f32.mrb[0].mxu0
        %v1875 = vadd.f32 %v1686, %v1874
        %v1876 = vpop.f32.mrb[0].mxu0
        %1877 = vmatprep.mubr.f32.mxu0 0.0
        %1878 = vmatmul.mubr.f32.gmra.mrb[0].mxu0 %v1658
        %v1879 = vpop.f32.mrb[0].mxu0
        %v1880 = vadd.f32 %v1686, %v1879
        %v1881 = vpop.f32.mrb[0].mxu0
        %1882 = vmatprep.mubr.f32.mxu0 0.0
        %1883 = vmatmul.mubr.f32.gmra.mrb[0].mxu0 %v1659
        %v1884 = vpop.f32.mrb[0].mxu0
        %v1885 = vadd.f32 %v1686, %v1884
        %v1886 = vpop.f32.mrb[0].mxu0
        %1887 = vmatprep.mubr.f32.mxu0 0.0
        %1888 = vmatmul.mubr.f32.gmra.mrb[0].mxu0 %v1660
        %v1889 = vpop.f32.mrb[0].mxu0
        %v1890 = vadd.f32 %v1686, %v1889
        %v1891 = vpop.f32.mrb[0].mxu0
        %1892 = vmatprep.mubr.f32.mxu0 0.0
        %1893 = vmatmul.mubr.f32.gmra.mrb[0].mxu0 %v1661
        %v1894 = vpop.f32.mrb[0].mxu0
        %v1895 = vadd.f32 %v1686, %v1894
        %v1896 = vpop.f32.mrb[0].mxu0
        %1897 = vmatprep.mubr.f32.mxu0 0.0
        %1898 = vmatmul.mubr.f32.gmra.mrb[0].mxu0 %v1662
        %v1899 = vpop.f32.mrb[0].mxu0
        %v1900 = vadd.f32 %v1686, %v1899
        %v1901 = vpop.f32.mrb[0].mxu0
        %1902 = vmatprep.mubr.f32.mxu0 0.0
        %1903 = vmatmul.mubr.f32.gmra.mrb[0].mxu0 %v1663
        %v1904 = vpop.f32.mrb[0].mxu0
        %v1905 = vadd.f32 %v1686, %v1904
        %v1906 = vpop.f32.mrb[0].mxu0
        %1907 = vmatprep.mubr.f32.mxu0 0.0
        %1908 = vmatmul.mubr.f32.gmra.mrb[0].mxu0 %v1664
        %v1909 = vpop.f32.mrb[0].mxu0
        %v1910 = vadd.f32 %v1686, %v1909
        %v1911 = vpop.f32.mrb[0].mxu0
        %1912 = vdwg.mxu0
        %v1913 = vadd.f32 %v1755, 3.0
        %v1914 = vadd.f32 %v1760, 3.0
        %v1915 = vadd.f32 %v1765, 3.0
        %v1916 = vadd.f32 %v1770, 3.0
        %v1917 = vadd.f32 %v1775, 3.0
        %v1918 = vadd.f32 %v1780, 3.0
        %v1919 = vadd.f32 %v1785, 3.0
        %v1920 = vadd.f32 %v1790, 3.0
        %v1921 = vadd.f32 %v1795, 3.0
        %v1922 = vadd.f32 %v1800, 3.0
        %v1923 = vadd.f32 %v1805, 3.0
        %v1924 = vadd.f32 %v1810, 3.0
        %v1925 = vadd.f32 %v1815, 3.0
        %v1926 = vadd.f32 %v1820, 3.0
        %v1927 = vadd.f32 %v1825, 3.0
        %v1928 = vadd.f32 %v1830, 3.0
        %v1929 = vadd.f32 %v1835, 3.0
        %v1930 = vadd.f32 %v1840, 3.0
        %v1931 = vadd.f32 %v1845, 3.0
        %v1932 = vadd.f32 %v1850, 3.0
        %v1933 = vadd.f32 %v1855, 3.0
        %v1934 = vadd.f32 %v1860, 3.0
        %v1935 = vadd.f32 %v1865, 3.0
        %v1936 = vadd.f32 %v1870, 3.0
        %v1937 = vadd.f32 %v1875, 3.0
        %v1938 = vadd.f32 %v1880, 3.0
        %v1939 = vadd.f32 %v1885, 3.0
        %v1940 = vadd.f32 %v1890, 3.0
        %v1941 = vadd.f32 %v1895, 3.0
        %v1942 = vadd.f32 %v1900, 3.0
        %v1943 = vadd.f32 %v1905, 3.0
        %v1944 = vadd.f32 %v1910, 3.0
        %v1945 = vmax.f32 %v1913, 0.0
        %v1946 = vmax.f32 %v1914, 0.0
        %v1947 = vmax.f32 %v1915, 0.0
        %v1948 = vmax.f32 %v1916, 0.0
        %v1949 = vmax.f32 %v1917, 0.0
        %v1950 = vmax.f32 %v1918, 0.0
        %v1951 = vmax.f32 %v1919, 0.0
        %v1952 = vmax.f32 %v1920, 0.0
        %v1953 = vmax.f32 %v1921, 0.0
        %v1954 = vmax.f32 %v1922, 0.0
        %v1955 = vmax.f32 %v1923, 0.0
        %v1956 = vmax.f32 %v1924, 0.0
        %v1957 = vmax.f32 %v1925, 0.0
        %v1958 = vmax.f32 %v1926, 0.0
        %v1959 = vmax.f32 %v1927, 0.0
        %v1960 = vmax.f32 %v1928, 0.0
        %v1961 = vmax.f32 %v1929, 0.0
        %v1962 = vmax.f32 %v1930, 0.0
        %v1963 = vmax.f32 %v1931, 0.0
        %v1964 = vmax.f32 %v1932, 0.0
        %v1965 = vmax.f32 %v1933, 0.0
        %v1966 = vmax.f32 %v1934, 0.0
        %v1967 = vmax.f32 %v1935, 0.0
        %v1968 = vmax.f32 %v1936, 0.0
        %v1969 = vmax.f32 %v1937, 0.0
        %v1970 = vmax.f32 %v1938, 0.0
        %v1971 = vmax.f32 %v1939, 0.0
        %v1972 = vmax.f32 %v1940, 0.0
        %v1973 = vmax.f32 %v1941, 0.0
        %v1974 = vmax.f32 %v1942, 0.0
        %v1975 = vmax.f32 %v1943, 0.0
        %v1976 = vmax.f32 %v1944, 0.0
        %v1977 = vmin.f32 %v1945, 6.0
        %v1978 = vmin.f32 %v1946, 6.0
        %v1979 = vmin.f32 %v1947, 6.0
        %v1980 = vmin.f32 %v1948, 6.0
        %v1981 = vmin.f32 %v1949, 6.0
        %v1982 = vmin.f32 %v1950, 6.0
        %v1983 = vmin.f32 %v1951, 6.0
        %v1984 = vmin.f32 %v1952, 6.0
        %v1985 = vmin.f32 %v1953, 6.0
        %v1986 = vmin.f32 %v1954, 6.0
        %v1987 = vmin.f32 %v1955, 6.0
        %v1988 = vmin.f32 %v1956, 6.0
        %v1989 = vmin.f32 %v1957, 6.0
        %v1990 = vmin.f32 %v1958, 6.0
        %v1991 = vmin.f32 %v1959, 6.0
        %v1992 = vmin.f32 %v1960, 6.0
        %v1993 = vmin.f32 %v1961, 6.0
        %v1994 = vmin.f32 %v1962, 6.0
        %v1995 = vmin.f32 %v1963, 6.0
        %v1996 = vmin.f32 %v1964, 6.0
        %v1997 = vmin.f32 %v1965, 6.0
        %v1998 = vmin.f32 %v1966, 6.0
        %v1999 = vmin.f32 %v1967, 6.0
        %v2000 = vmin.f32 %v1968, 6.0
        %v2001 = vmin.f32 %v1969, 6.0
        %v2002 = vmin.f32 %v1970, 6.0
        %v2003 = vmin.f32 %v1971, 6.0
        %v2004 = vmin.f32 %v1972, 6.0
        %v2005 = vmin.f32 %v1973, 6.0
        %v2006 = vmin.f32 %v1974, 6.0
        %v2007 = vmin.f32 %v1975, 6.0
        %v2008 = vmin.f32 %v1976, 6.0
        %v2009 = vmul.f32 %v1755, %v1977
        %v2010 = vmul.f32 %v1760, %v1978
        %v2011 = vmul.f32 %v1765, %v1979
        %v2012 = vmul.f32 %v1770, %v1980
        %v2013 = vmul.f32 %v1775, %v1981
        %v2014 = vmul.f32 %v1780, %v1982
        %v2015 = vmul.f32 %v1785, %v1983
        %v2016 = vmul.f32 %v1790, %v1984
        %v2017 = vmul.f32 %v1795, %v1985
        %v2018 = vmul.f32 %v1800, %v1986
        %v2019 = vmul.f32 %v1805, %v1987
        %v2020 = vmul.f32 %v1810, %v1988
        %v2021 = vmul.f32 %v1815, %v1989
        %v2022 = vmul.f32 %v1820, %v1990
        %v2023 = vmul.f32 %v1825, %v1991
        %v2024 = vmul.f32 %v1830, %v1992
        %v2025 = vmul.f32 %v1835, %v1993
        %v2026 = vmul.f32 %v1840, %v1994
        %v2027 = vmul.f32 %v1845, %v1995
        %v2028 = vmul.f32 %v1850, %v1996
        %v2029 = vmul.f32 %v1855, %v1997
        %v2030 = vmul.f32 %v1860, %v1998
        %v2031 = vmul.f32 %v1865, %v1999
        %v2032 = vmul.f32 %v1870, %v2000
        %v2033 = vmul.f32 %v1875, %v2001
        %v2034 = vmul.f32 %v1880, %v2002
        %v2035 = vmul.f32 %v1885, %v2003
        %v2036 = vmul.f32 %v1890, %v2004
        %v2037 = vmul.f32 %v1895, %v2005
        %v2038 = vmul.f32 %v1900, %v2006
        %v2039 = vmul.f32 %v1905, %v2007
        %v2040 = vmul.f32 %v1910, %v2008
        %v2041 = vmul.f32 %v2009, 0.16666667
        %v2042 = vmul.f32 %v2010, 0.16666667
        %v2043 = vmul.f32 %v2011, 0.16666667
        %v2044 = vmul.f32 %v2012, 0.16666667
        %v2045 = vmul.f32 %v2013, 0.16666667
        %v2046 = vmul.f32 %v2014, 0.16666667
        %v2047 = vmul.f32 %v2015, 0.16666667
        %v2048 = vmul.f32 %v2016, 0.16666667
        %v2049 = vmul.f32 %v2017, 0.16666667
        %v2050 = vmul.f32 %v2018, 0.16666667
        %v2051 = vmul.f32 %v2019, 0.16666667
        %v2052 = vmul.f32 %v2020, 0.16666667
        %v2053 = vmul.f32 %v2021, 0.16666667
        %v2054 = vmul.f32 %v2022, 0.16666667
        %v2055 = vmul.f32 %v2023, 0.16666667
        %v2056 = vmul.f32 %v2024, 0.16666667
        %v2057 = vmul.f32 %v2025, 0.16666667
        %v2058 = vmul.f32 %v2026, 0.16666667
        %v2059 = vmul.f32 %v2027, 0.16666667
        %v2060 = vmul.f32 %v2028, 0.16666667
        %v2061 = vmul.f32 %v2029, 0.16666667
        %v2062 = vmul.f32 %v2030, 0.16666667
        %v2063 = vmul.f32 %v2031, 0.16666667
        %v2064 = vmul.f32 %v2032, 0.16666667
        %v2065 = vmul.f32 %v2033, 0.16666667
        %v2066 = vmul.f32 %v2034, 0.16666667
        %v2067 = vmul.f32 %v2035, 0.16666667
        %v2068 = vmul.f32 %v2036, 0.16666667
        %v2069 = vmul.f32 %v2037, 0.16666667
        %v2070 = vmul.f32 %v2038, 0.16666667
        %v2071 = vmul.f32 %v2039, 0.16666667
        %v2072 = vmul.f32 %v2040, 0.16666667
        %2073 = vst [vmem:[%s453] sm:$0xff] %v2041
        %2074 = vst [vmem:[%s453 + $0x8] sm:$0xff] %v2042
        %2075 = vst [vmem:[%s453 + $0x10] sm:$0xff] %v2043
        %2076 = vst [vmem:[%s453 + $0x18] sm:$0xff] %v2044
        %2077 = vst [vmem:[%s453 + $0x20] sm:$0xff] %v2045
        %2078 = vst [vmem:[%s453 + $0x28] sm:$0xff] %v2046
        %2079 = vst [vmem:[%s453 + $0x30] sm:$0xff] %v2047
        %2080 = vst [vmem:[%s453 + $0x38] sm:$0xff] %v2048
        %2081 = vst [vmem:[%s453 + $0x40] sm:$0xff] %v2049
        %2082 = vst [vmem:[%s453 + $0x48] sm:$0xff] %v2050
        %2083 = vst [vmem:[%s453 + $0x50] sm:$0xff] %v2051
        %2084 = vst [vmem:[%s453 + $0x58] sm:$0xff] %v2052
        %2085 = vst [vmem:[%s453 + $0x60] sm:$0xff] %v2053
        %2086 = vst [vmem:[%s453 + $0x68] sm:$0xff] %v2054
        %2087 = vst [vmem:[%s453 + $0x70] sm:$0xff] %v2055
        %2088 = vst [vmem:[%s453 + $0x78] sm:$0xff] %v2056
        %2089 = vst [vmem:[%s453 + $0x80] sm:$0xff] %v2057
        %2090 = vst [vmem:[%s453 + $0x88] sm:$0xff] %v2058
        %2091 = vst [vmem:[%s453 + $0x90] sm:$0xff] %v2059
        %2092 = vst [vmem:[%s453 + $0x98] sm:$0xff] %v2060
        %2093 = vst [vmem:[%s453 + $0xa0] sm:$0xff] %v2061
        %2094 = vst [vmem:[%s453 + $0xa8] sm:$0xff] %v2062
        %2095 = vst [vmem:[%s453 + $0xb0] sm:$0xff] %v2063
        %2096 = vst [vmem:[%s453 + $0xb8] sm:$0xff] %v2064
        %2097 = vst [vmem:[%s453 + $0xc0] sm:$0xff] %v2065
        %2098 = vst [vmem:[%s453 + $0xc8] sm:$0xff] %v2066
        %2099 = vst [vmem:[%s453 + $0xd0] sm:$0xff] %v2067
        %2100 = vst [vmem:[%s453 + $0xd8] sm:$0xff] %v2068
        %2101 = vst [vmem:[%s453 + $0xe0] sm:$0xff] %v2069
        %2102 = vst [vmem:[%s453 + $0xe8] sm:$0xff] %v2070
        %2103 = vst [vmem:[%s453 + $0xf0] sm:$0xff] %v2071
        %2104 = vst [vmem:[%s453 + $0xf8] sm:$0xff] %v2072
        %s2105 = sand.u32 %s234, 1
        %s2106 = scalar_lea.sflag [#allocation5], %s2105
        %s2107 = sand.u32 %s234, 1
        %s2108 = smul.addr %s2107, 256
        %s2109 = scalar_lea.vmem [#allocation12], %s2108
        // Predicated region
        $region85: #{tpu_custom_call.1} parent=47 // pred_check
          %p2110 = pneg %p244
        $region86: #{tpu_custom_call.1} parent=47 // pred_check_branch
          %2112 = sbr.rel (%p2110) target = $region88
        $region87: #{tpu_custom_call.1} parent=47 // pred_region
          %s2113 = smul.u32 16, %s33
          %s2115 = ssub.s32 4096, 4096
          %2116 = vsyncadd %s2106, %s2115
          %s2117 = smul.addr %s2113, 2
          %s2118 = smul.addr %s32, 32
          %s2119 = sadd.s32 %s2117, %s2118
          %s2120 = smul.addr %s2119, 128
          %s2121 = scalar_lea.hbm %s7, %s2120
          %s2122 = sshll.u32 %s2109, 4
          %s2123 = int_to_ptr.vmem [resolvable:$true] %s2122
          %2128 = dma.vmem_to_hbm [thread:$0]  %s2123, 4096, %s2121, %s2106, 128, 128, 8
        $region88: #{tpu_custom_call.1} parent=47 // pred_fallthru
          _
      $region48: #{tpu_custom_call.1} parent=5 // pred_fallthru
        _
      %p2129 = scmp.le.s32.totalorder 2, %s23
      // Predicated region
      $region89: #{tpu_custom_call.1} parent=5 // pred_check
        %p2130 = pneg %p2129
      $region90: #{tpu_custom_call.1} parent=5 // pred_check_branch
        %2132 = sbr.rel (%p2130) target = $region92
      $region91: #{tpu_custom_call.1} parent=5 // pred_region
        %s2133 = ssub.s32 %s23, 2
        // Predicated region
        $region93: #{tpu_custom_call.1} parent=91 // pred_check
          %p2134 = pneg %p250
        $region94: #{tpu_custom_call.1} parent=91 // pred_check_branch
          %2136 = sbr.rel (%p2134) target = $region96
        $region95: #{tpu_custom_call.1} parent=91 // pred_region
          %s2137 = sand.u32 %s235, 1
          %s2138 = scalar_lea.sflag [#allocation5], %s2137
          %s2139 = sand.u32 %s235, 1
          %s2140 = smul.addr %s2139, 256
          %s2141 = scalar_lea.vmem [#allocation12], %s2140
          %2142 = dma.done %s2138, 4096
        $region96: #{tpu_custom_call.1} parent=91 // pred_fallthru
          _
      $region92: #{tpu_custom_call.1} parent=5 // pred_fallthru
        _
    $region6: #{tpu_custom_call.1} parent=1 // loop_footer
      %s27 = sadd.s32 1, %s23
    $region7: #{tpu_custom_call.1} parent=1 // loop_footer_branch
      %22 = sbr.rel target = $region3
    $region8: #{tpu_custom_call.1} parent=1 // loop_exit
      _
    %2143 = vsyncpa [#allocation4], 1
    %s2144 = scalar_lea.sflag [#allocation4], 1
    %2145 = vsyncpa %s2144, 1
    %2146 = vsyncpa [#allocation7], 1
    %s2147 = scalar_lea.sflag [#allocation7], 1
    %2148 = vsyncpa %s2147, 1
    %2149 = vsyncpa [#allocation10], 1
    %2150 = vsyncpa [#allocation5], 1
    %s2151 = scalar_lea.sflag [#allocation5], 1
    %2152 = vsyncpa %s2151, 1

</llo_original>
